<compile_context>
chip_gen: v7x
topology: tpu7x:2x2x1
jax: 0.10.0
libtpu: 0.0.40
codegen_flags: <defaults>
</compile_context>

<pallas_src>
import jax
import jax.numpy as jnp
from jax import lax
from jax.experimental import pallas as pl
from jax.experimental.pallas import tpu as pltpu

# small, self-consistent shapes
B = 2            # batch
S = 8            # title/content sequence length
H = 16           # encoder_hidden_size
D = 2 * H        # contexts dim = n_z = decoder_hidden_size = comment dim
K = 4            # n_topic_num
TAU = 1.0        # config.tau
EPS = 1e-10


def fused_kernel(ctx_ref, cmn_ref, mask_ref, len_ref, lnoise_ref, gnoise_ref,
                 w1cat_ref, wadd_ref, w2t_ref, wlat_ref,
                 badd_ref, b2_ref, blat_ref,
                 gates_out, sel_user_out, sel_topic_out, scal_out):
    # ---- per-batch-row tiles ------------------------------------------------
    ctx_bf = ctx_ref[0]                       # (S, D) bf16 (streamed in bf16)
    ctx = ctx_bf.astype(jnp.float32)          # f32 copy for element-wise math
    cmn = cmn_ref[0]                          # (3, D): [comment | news | news_prev]
    cm = cmn[0:1]                             # (1, D)
    news = cmn[1:2]
    news_neg = cmn[2:3]
    mask = mask_ref[0]                        # (S, 1)
    clen = len_ref[0]                         # (1, 1)
    logistic = lnoise_ref[0]                  # (S, 2)  g0-g1 ~ Logistic per head
    g_top = gnoise_ref[0]                     # (1, K)  gumbel noise for topics

    # ---- fused SelectGate / PostSelectGate first layers (one MXU matmul) ----
    hpre = jnp.dot(ctx_bf, w1cat_ref[...],
                   preferred_element_type=jnp.float32)             # (S, 2H)
    add = jnp.dot(cm.astype(jnp.bfloat16), wadd_ref[...],
                  preferred_element_type=jnp.float32) + badd_ref[...]  # (1, 2H)
    h = jnp.maximum(hpre + add, 0.0)                               # (S, 2H)

    # ---- second layers as VPU broadcast-mult + lane reductions --------------
    # w2t rows are block-diagonal packed logit DIFFERENCES (softmax over
    # 2 classes == sigmoid of the logit difference).
    w2t = w2t_ref[...]                                             # (2, 2H) f32
    d_sel = jnp.sum(h * w2t[0:1, :], axis=-1, keepdims=True)       # (S, 1)
    d_post = jnp.sum(h * w2t[1:2, :], axis=-1, keepdims=True)      # (S, 1)
    diffs = jnp.concatenate([d_sel, d_post], axis=-1) + b2_ref[...]  # (S, 2)

    p = 1.0 / (1.0 + jnp.exp(-diffs))                 # org gates[..., 0], (S, 2)
    # gumbel-softmax over 2 classes: use diffs directly (== log(p)-log(1-p),
    # no f32 saturation, no extra EUP logs)
    gates2 = 1.0 / (1.0 + jnp.exp(-(diffs + logistic) / TAU))       # (S, 2)

    org_ctx0 = p[:, 0:1]
    org_post0 = p[:, 1:2]
    ctx_g = gates2[:, 0:1]
    post_g = gates2[:, 1:2]

    # ---- kld_select (per-row partial; batch mean done in XLA) ---------------
    p1, p2 = org_post0, org_ctx0
    kl = p1 * jnp.log((p1 + EPS) / (p2 + EPS)) + \
        (1.0 - p1) * jnp.log((1.0 - p1 + EPS) / (1.0 - p2 + EPS))
    kld = jnp.sum(kl * mask, axis=0, keepdims=True) / clen          # (1, 1)

    # ---- gated pooling -> init_state (config.use_post = True) ---------------
    gate_mask = jnp.where((post_g > 0.5) & (mask > 0.5), 1.0, 0.0)  # (S, 1)
    gate_len = jnp.sum(gate_mask, axis=0, keepdims=True) + 1.0      # (1, 1)
    init_state = jnp.sum(ctx * gate_mask, axis=0, keepdims=True) / gate_len  # (1, D)

    # ---- LatentMap (single packed matmul) + topic attention -----------------
    t_all = jnp.dot(init_state.astype(jnp.bfloat16), wlat_ref[...],
                    preferred_element_type=jnp.float32) + blat_ref[...]  # (1, K*D)
    t_list = [t_all[:, k * D:(k + 1) * D] for k in range(K)]        # K x (1, D)
    att = jnp.concatenate(
        [jnp.sum(t_k * cm, axis=-1, keepdims=True) for t_k in t_list],
        axis=-1)                                                    # (1, K)

    # softmax((log softmax(att) + g)/tau) == softmax((att + g)/tau) (row shift)
    y = (att + g_top) / TAU
    e = jnp.exp(y - jnp.max(y, axis=-1, keepdims=True))
    topic_gates = e / jnp.sum(e, axis=-1, keepdims=True)            # (1, K)

    mx = jnp.max(topic_gates, axis=-1, keepdims=True)
    idx = lax.broadcasted_iota(jnp.int32, (1, K), 1)
    sel = jnp.min(jnp.where(topic_gates == mx, idx, K),
                  axis=-1, keepdims=True)                           # (1, 1)

    sel_topic = t_list[0] * topic_gates[:, 0:1]
    for k in range(1, K):
        sel_topic = sel_topic + t_list[k] * topic_gates[:, k:k + 1]  # (1, D)

    # ---- rank loss (O(B*D): roll done in the wrapper) -----------------------
    pos = jnp.sum(cm * news, axis=-1, keepdims=True)                # (1, 1)
    neg = jnp.sum(cm * news_neg, axis=-1, keepdims=True)            # (1, 1)
    rank = jnp.maximum(1.0 - pos + neg, 0.0)                        # (1, 1)

    # ---- gate regularizers (per-row partials) -------------------------------
    l1 = jnp.sum(post_g * mask, axis=0, keepdims=True) / clen       # (1, 1)
    pri = jnp.sum(ctx_g * mask, axis=0, keepdims=True) / clen       # (1, 1)

    # ---- outputs -------------------------------------------------------------
    gates_out[0] = gates2                                           # (S, 2)
    sel_user_out[0] = sel.astype(jnp.int32)                         # (1, 1)
    sel_topic_out[0] = sel_topic                                    # (1, D)
    scal_out[0] = jnp.concatenate([rank, l1, pri, kld], axis=-1)    # (1, 4)


def init_params(key):
    """PyTorch-Linear-style init, then pack / pre-cast for the fused kernel."""
    keys = jax.random.split(key, 4 + K)

    def lin(k, fin, fout):
        bound = 1.0 / float(fin) ** 0.5
        kw, kb = jax.random.split(k)
        w = jax.random.uniform(kw, (fin, fout), jnp.float32, -bound, bound)
        b = jax.random.uniform(kb, (fout,), jnp.float32, -bound, bound)
        return w, b

    w1, b1 = lin(keys[0], D, H)            # SelectGate.linear1
    w2, b2 = lin(keys[1], H, 2)            # SelectGate.linear2
    w1p, b1p = lin(keys[2], 2 * D, H)      # PostSelectGate.linear1 ([ctx, comment])
    w2p, b2p = lin(keys[3], H, 2)          # PostSelectGate.linear2
    wlat_list, blat_list = [], []
    for k in range(K):                     # LatentMap.latents[k]
        w, b = lin(keys[4 + k], D, D)
        wlat_list.append(w)
        blat_list.append(b)

    w1pa, w1pb = w1p[:D], w1p[D:]
    # fused first layer on the contexts path: [select-head | post-head ctx part]
    w1cat = jnp.concatenate([w1, w1pa], axis=1).astype(jnp.bfloat16)          # (D, 2H)
    # comment-side additive path (select head receives only its bias)
    wadd = jnp.concatenate([jnp.zeros_like(w1pb), w1pb], axis=1).astype(jnp.bfloat16)  # (D, 2H)
    badd = jnp.concatenate([b1, b1p])[None, :]                                # (1, 2H)
    # second layers reduced to logit differences, block-diagonal packed, row-major for VPU use
    w2t = jnp.zeros((2, 2 * H), jnp.float32)
    w2t = w2t.at[0, :H].set(w2[:, 0] - w2[:, 1]).at[1, H:].set(w2p[:, 0] - w2p[:, 1])
    b2pk = jnp.array([[b2[0] - b2[1], b2p[0] - b2p[1]]], jnp.float32)          # (1, 2)
    # LatentMap packed into a single (D, K*D) weight (bf16 for the MXU)
    wlatp = jnp.concatenate(wlat_list, axis=1).astype(jnp.bfloat16)            # (D, K*D)
    blatp = jnp.concatenate(blat_list)[None, :]                                # (1, K*D)
    return dict(w1cat=w1cat, wadd=wadd, badd=badd, w2t=w2t, b2=b2pk,
                wlatp=wlatp, blat=blatp)


@jax.jit
def forward(contexts, comment_rep, news_rep, content_mask, content_len, params, key):
    # layout plumbing + noise generation in XLA (cheap, HBM-side), not in-kernel
    ctx_bf = contexts.astype(jnp.bfloat16)                        # stream ctx in bf16
    news_neg = jnp.roll(news_rep, 1, axis=0)                      # torch.roll(news_rep, 1, 0)
    cmn = jnp.stack([comment_rep, news_rep, news_neg], axis=1)    # (B, 3, D)
    mask3 = content_mask[:, :, None]                              # (B, S, 1)
    len3 = content_len[:, :, None]                                # (B, 1, 1)

    k_gate, k_top = jax.random.split(key)
    # difference of two iid Gumbels is a standard Logistic (one per gate head)
    lnoise = jax.random.logistic(k_gate, (B, S, 2), jnp.float32)
    gnoise = jax.random.gumbel(k_top, (B, 1, K), jnp.float32)

    def row(shape):        # per-batch-row tile
        return pl.BlockSpec((1,) + shape, lambda b: (b, 0, 0))

    def whole(shape):      # grid-invariant weight/bias (kept resident)
        return pl.BlockSpec(shape, lambda b: (0, 0))

    in_specs = [
        row((S, D)),            # contexts (bf16)
        row((3, D)),            # [comment | news | news_prev]
        row((S, 1)),            # content_mask
        row((1, 1)),            # content_len
        row((S, 2)),            # logistic noise (binary gates)
        row((1, K)),            # gumbel noise (topics)
        whole((D, 2 * H)),      # w1cat (bf16)
        whole((D, 2 * H)),      # wadd  (bf16)
        whole((2, 2 * H)),      # w2t   (f32, VPU path)
        whole((D, K * D)),      # wlatp (bf16)
        whole((1, 2 * H)),      # badd
        whole((1, 2)),          # b2 (packed logit-diff biases)
        whole((1, K * D)),      # blat
    ]
    out_specs = (
        row((S, 2)),            # [context_gates | post_context_gates]
        row((1, 1)),            # selected_user
        row((1, D)),            # select_topic
        row((1, 4)),            # per-row [rank, l1, pri, kld] partials
    )
    out_shapes = (
        jax.ShapeDtypeStruct((B, S, 2), jnp.float32),
        jax.ShapeDtypeStruct((B, 1, 1), jnp.int32),
        jax.ShapeDtypeStruct((B, 1, D), jnp.float32),
        jax.ShapeDtypeStruct((B, 1, 4), jnp.float32),
    )

    gates, sel_user, sel_topic, scal = pl.pallas_call(
        fused_kernel,
        grid=(B,),
        in_specs=in_specs,
        out_specs=out_specs,
        out_shape=out_shapes,
        compiler_params=pltpu.CompilerParams(
            dimension_semantics=("parallel",)),
    )(ctx_bf, cmn, mask3, len3, lnoise, gnoise,
      params['w1cat'], params['wadd'], params['w2t'], params['wlatp'],
      params['badd'], params['b2'], params['blat'])

    # batch-mean of the per-row loss partials in XLA (keeps the grid parallel)
    return {
        'context_gates': gates[:, :, 0],
        'post_context_gates': gates[:, :, 1],
        'selected_user': sel_user[:, 0, 0],
        'select_topic': sel_topic[:, 0, :],
        'rank': jnp.mean(scal[:, 0, 0]),
        'l1_gates': jnp.mean(scal[:, 0, 1]),
        'pri_gates': jnp.mean(scal[:, 0, 2]),
        'kld_select': jnp.mean(scal[:, 0, 3]),
    }


if __name__ == "__main__":
    key = jax.random.PRNGKey(0)
    k1, k2, k3, kp, kn = jax.random.split(key, 5)

    # stand-ins for rnn_encoder / comment_encoder outputs
    contexts = jax.random.normal(k1, (B, S, D), jnp.float32)
    comment_rep = jax.random.normal(k2, (B, D), jnp.float32)
    news_rep = jax.random.normal(k3, (B, D), jnp.float32)

    content_len_i = jnp.array([S, S - 2], jnp.int32)
    content_mask = (jnp.arange(S)[None, :] < content_len_i[:, None]).astype(jnp.float32)
    content_len = content_len_i.astype(jnp.float32)[:, None]

    params = init_params(kp)

    out = forward(contexts, comment_rep, news_rep, content_mask, content_len, params, kn)
    jax.block_until_ready(out)
    print("KERNEL_OK")
</pallas_src>

<mosaic_0001>
module attributes {stable_mosaic.version = 11 : i64} {
  func.func @fused_kernel(%arg0: i32, %arg1: memref<1x8x32xbf16, #tpu.memory_space<vmem>>, %arg2: memref<1x3x32xf32, #tpu.memory_space<vmem>>, %arg3: memref<1x8x1xf32, #tpu.memory_space<vmem>>, %arg4: memref<1x1x1xf32, #tpu.memory_space<vmem>>, %arg5: memref<1x8x2xf32, #tpu.memory_space<vmem>>, %arg6: memref<1x1x4xf32, #tpu.memory_space<vmem>>, %arg7: memref<32x32xbf16, #tpu.memory_space<vmem>>, %arg8: memref<32x32xbf16, #tpu.memory_space<vmem>>, %arg9: memref<2x32xf32, #tpu.memory_space<vmem>>, %arg10: memref<32x128xbf16, #tpu.memory_space<vmem>>, %arg11: memref<1x32xf32, #tpu.memory_space<vmem>>, %arg12: memref<1x2xf32, #tpu.memory_space<vmem>>, %arg13: memref<1x128xf32, #tpu.memory_space<vmem>>, %arg14: memref<1x8x2xf32, #tpu.memory_space<vmem>>, %arg15: memref<1x1x1xi32, #tpu.memory_space<vmem>>, %arg16: memref<1x1x32xf32, #tpu.memory_space<vmem>>, %arg17: memref<1x1x4xf32, #tpu.memory_space<vmem>>) attributes {dimension_semantics = [#tpu.dimension_semantics<parallel>], iteration_bounds = array<i64: 2>, scalar_prefetch = 0 : i64, scratch_operands = 0 : i64, tpu.core_type = #tpu.core_type<tc>, window_params = [{transform_indices = @transform_0, window_bounds = array<i64: 1, 8, 32>}, {transform_indices = @transform_1, window_bounds = array<i64: 1, 3, 32>}, {transform_indices = @transform_2, window_bounds = array<i64: 1, 8, 1>}, {transform_indices = @transform_3, window_bounds = array<i64: 1, 1, 1>}, {transform_indices = @transform_4, window_bounds = array<i64: 1, 8, 2>}, {transform_indices = @transform_5, window_bounds = array<i64: 1, 1, 4>}, {pipeline_mode = #tpu.pipeline_mode<synchronous>, transform_indices = @transform_6, window_bounds = array<i64: 32, 32>}, {pipeline_mode = #tpu.pipeline_mode<synchronous>, transform_indices = @transform_7, window_bounds = array<i64: 32, 32>}, {pipeline_mode = #tpu.pipeline_mode<synchronous>, transform_indices = @transform_8, window_bounds = array<i64: 2, 32>}, {pipeline_mode = #tpu.pipeline_mode<synchronous>, transform_indices = @transform_9, window_bounds = array<i64: 32, 128>}, {pipeline_mode = #tpu.pipeline_mode<synchronous>, transform_indices = @transform_10, window_bounds = array<i64: 1, 32>}, {pipeline_mode = #tpu.pipeline_mode<synchronous>, transform_indices = @transform_11, window_bounds = array<i64: 1, 2>}, {pipeline_mode = #tpu.pipeline_mode<synchronous>, transform_indices = @transform_12, window_bounds = array<i64: 1, 128>}, {transform_indices = @transform_13, window_bounds = array<i64: 1, 8, 2>}, {transform_indices = @transform_14, window_bounds = array<i64: 1, 1, 1>}, {transform_indices = @transform_15, window_bounds = array<i64: 1, 1, 32>}, {transform_indices = @transform_16, window_bounds = array<i64: 1, 1, 4>}]} {
    %c0 = arith.constant 0 : index
    %c0_0 = arith.constant 0 : index
    %c0_1 = arith.constant 0 : index
    %0 = vector.load %arg1[%c0, %c0_0, %c0_1] : memref<1x8x32xbf16, #tpu.memory_space<vmem>>, vector<1x8x32xbf16>
    %1 = vector.shape_cast %0 : vector<1x8x32xbf16> to vector<8x32xbf16>
    %2 = arith.extf %1 : vector<8x32xbf16> to vector<8x32xf32>
    %c0_2 = arith.constant 0 : index
    %c0_3 = arith.constant 0 : index
    %c0_4 = arith.constant 0 : index
    %3 = vector.load %arg2[%c0_2, %c0_3, %c0_4] : memref<1x3x32xf32, #tpu.memory_space<vmem>>, vector<1x3x32xf32>
    %4 = vector.shape_cast %3 : vector<1x3x32xf32> to vector<3x32xf32>
    %5 = vector.extract_strided_slice %4 {offsets = [0, 0], sizes = [1, 32], strides = [1, 1]} : vector<3x32xf32> to vector<1x32xf32>
    %6 = vector.extract_strided_slice %4 {offsets = [1, 0], sizes = [1, 32], strides = [1, 1]} : vector<3x32xf32> to vector<1x32xf32>
    %7 = vector.extract_strided_slice %4 {offsets = [2, 0], sizes = [1, 32], strides = [1, 1]} : vector<3x32xf32> to vector<1x32xf32>
    %c0_5 = arith.constant 0 : index
    %c0_6 = arith.constant 0 : index
    %c0_7 = arith.constant 0 : index
    %8 = vector.load %arg3[%c0_5, %c0_6, %c0_7] : memref<1x8x1xf32, #tpu.memory_space<vmem>>, vector<1x8x1xf32>
    %9 = vector.shape_cast %8 : vector<1x8x1xf32> to vector<8x1xf32>
    %c0_8 = arith.constant 0 : index
    %c0_9 = arith.constant 0 : index
    %c0_10 = arith.constant 0 : index
    %10 = vector.load %arg4[%c0_8, %c0_9, %c0_10] : memref<1x1x1xf32, #tpu.memory_space<vmem>>, vector<1x1x1xf32>
    %11 = vector.shape_cast %10 : vector<1x1x1xf32> to vector<1x1xf32>
    %c0_11 = arith.constant 0 : index
    %c0_12 = arith.constant 0 : index
    %c0_13 = arith.constant 0 : index
    %12 = vector.load %arg5[%c0_11, %c0_12, %c0_13] : memref<1x8x2xf32, #tpu.memory_space<vmem>>, vector<1x8x2xf32>
    %13 = vector.shape_cast %12 : vector<1x8x2xf32> to vector<8x2xf32>
    %c0_14 = arith.constant 0 : index
    %c0_15 = arith.constant 0 : index
    %c0_16 = arith.constant 0 : index
    %14 = vector.load %arg6[%c0_14, %c0_15, %c0_16] : memref<1x1x4xf32, #tpu.memory_space<vmem>>, vector<1x1x4xf32>
    %15 = vector.shape_cast %14 : vector<1x1x4xf32> to vector<1x4xf32>
    %c0_17 = arith.constant 0 : index
    %c0_18 = arith.constant 0 : index
    %16 = vector.load %arg7[%c0_17, %c0_18] : memref<32x32xbf16, #tpu.memory_space<vmem>>, vector<32x32xbf16>
    %cst = arith.constant dense<0.000000e+00> : vector<8x32xf32>
    %17 = tpu.matmul %1, %16, %cst {dimension_numbers = #tpu.dot_dimension_numbers<[1], [0], [0], [1], [0, 0, 1, 1], [], []>} : vector<8x32xbf16>, vector<32x32xbf16>, vector<8x32xf32> -> vector<8x32xf32>
    %18 = arith.truncf %5 : vector<1x32xf32> to vector<1x32xbf16>
    %c0_19 = arith.constant 0 : index
    %c0_20 = arith.constant 0 : index
    %19 = vector.load %arg8[%c0_19, %c0_20] : memref<32x32xbf16, #tpu.memory_space<vmem>>, vector<32x32xbf16>
    %cst_21 = arith.constant dense<0.000000e+00> : vector<1x32xf32>
    %20 = tpu.matmul %18, %19, %cst_21 {dimension_numbers = #tpu.dot_dimension_numbers<[1], [0], [0], [1], [0, 0, 1, 1], [], []>} : vector<1x32xbf16>, vector<32x32xbf16>, vector<1x32xf32> -> vector<1x32xf32>
    %c0_22 = arith.constant 0 : index
    %c0_23 = arith.constant 0 : index
    %21 = vector.load %arg11[%c0_22, %c0_23] : memref<1x32xf32, #tpu.memory_space<vmem>>, vector<1x32xf32>
    %22 = arith.addf %20, %21 : vector<1x32xf32>
    %23 = vector.broadcast %22 : vector<1x32xf32> to vector<8x32xf32>
    %24 = arith.addf %17, %23 : vector<8x32xf32>
    %cst_24 = arith.constant 0.000000e+00 : f32
    %25 = vector.broadcast %cst_24 : f32 to vector<8x32xf32>
    %26 = arith.maximumf %24, %25 : vector<8x32xf32>
    %c0_25 = arith.constant 0 : index
    %c0_26 = arith.constant 0 : index
    %27 = vector.load %arg9[%c0_25, %c0_26] : memref<2x32xf32, #tpu.memory_space<vmem>>, vector<2x32xf32>
    %28 = vector.extract_strided_slice %27 {offsets = [0, 0], sizes = [1, 32], strides = [1, 1]} : vector<2x32xf32> to vector<1x32xf32>
    %29 = vector.broadcast %28 : vector<1x32xf32> to vector<8x32xf32>
    %30 = arith.mulf %26, %29 : vector<8x32xf32>
    %cst_27 = arith.constant dense<0.000000e+00> : vector<8xf32>
    %31 = vector.multi_reduction <add>, %30, %cst_27 [1] : vector<8x32xf32> to vector<8xf32>
    %32 = vector.shape_cast %31 : vector<8xf32> to vector<8x1xf32>
    %33 = vector.extract_strided_slice %27 {offsets = [1, 0], sizes = [1, 32], strides = [1, 1]} : vector<2x32xf32> to vector<1x32xf32>
    %34 = vector.broadcast %33 : vector<1x32xf32> to vector<8x32xf32>
    %35 = arith.mulf %26, %34 : vector<8x32xf32>
    %cst_28 = arith.constant dense<0.000000e+00> : vector<8xf32>
    %36 = vector.multi_reduction <add>, %35, %cst_28 [1] : vector<8x32xf32> to vector<8xf32>
    %37 = vector.shape_cast %36 : vector<8xf32> to vector<8x1xf32>
    %38 = tpu.concatenate %32, %37 in 1 : vector<8x1xf32>, vector<8x1xf32> -> vector<8x2xf32>
    %c0_29 = arith.constant 0 : index
    %c0_30 = arith.constant 0 : index
    %39 = vector.load %arg12[%c0_29, %c0_30] : memref<1x2xf32, #tpu.memory_space<vmem>>, vector<1x2xf32>
    %40 = vector.broadcast %39 : vector<1x2xf32> to vector<8x2xf32>
    %41 = arith.addf %38, %40 : vector<8x2xf32>
    %cst_31 = arith.constant 0.000000e+00 : f32
    %42 = vector.broadcast %cst_31 : f32 to vector<8x2xf32>
    %43 = arith.subf %42, %41 : vector<8x2xf32>
    %44 = math.exp %43 : vector<8x2xf32>
    %cst_32 = arith.constant 1.000000e+00 : f32
    %45 = vector.broadcast %cst_32 : f32 to vector<8x2xf32>
    %46 = arith.addf %45, %44 : vector<8x2xf32>
    %cst_33 = arith.constant 1.000000e+00 : f32
    %47 = vector.broadcast %cst_33 : f32 to vector<8x2xf32>
    %48 = arith.divf %47, %46 : vector<8x2xf32>
    %49 = arith.addf %41, %13 : vector<8x2xf32>
    %cst_34 = arith.constant 0.000000e+00 : f32
    %50 = vector.broadcast %cst_34 : f32 to vector<8x2xf32>
    %51 = arith.subf %50, %49 : vector<8x2xf32>
    %cst_35 = arith.constant 1.000000e+00 : f32
    %52 = vector.broadcast %cst_35 : f32 to vector<8x2xf32>
    %53 = arith.divf %51, %52 : vector<8x2xf32>
    %54 = math.exp %53 : vector<8x2xf32>
    %cst_36 = arith.constant 1.000000e+00 : f32
    %55 = vector.broadcast %cst_36 : f32 to vector<8x2xf32>
    %56 = arith.addf %55, %54 : vector<8x2xf32>
    %cst_37 = arith.constant 1.000000e+00 : f32
    %57 = vector.broadcast %cst_37 : f32 to vector<8x2xf32>
    %58 = arith.divf %57, %56 : vector<8x2xf32>
    %59 = vector.extract_strided_slice %48 {offsets = [0, 0], sizes = [8, 1], strides = [1, 1]} : vector<8x2xf32> to vector<8x1xf32>
    %60 = vector.extract_strided_slice %48 {offsets = [0, 1], sizes = [8, 1], strides = [1, 1]} : vector<8x2xf32> to vector<8x1xf32>
    %61 = vector.extract_strided_slice %58 {offsets = [0, 0], sizes = [8, 1], strides = [1, 1]} : vector<8x2xf32> to vector<8x1xf32>
    %62 = vector.extract_strided_slice %58 {offsets = [0, 1], sizes = [8, 1], strides = [1, 1]} : vector<8x2xf32> to vector<8x1xf32>
    %cst_38 = arith.constant 1.000000e-10 : f32
    %63 = vector.broadcast %cst_38 : f32 to vector<8x1xf32>
    %64 = arith.addf %60, %63 : vector<8x1xf32>
    %cst_39 = arith.constant 1.000000e-10 : f32
    %65 = vector.broadcast %cst_39 : f32 to vector<8x1xf32>
    %66 = arith.addf %59, %65 : vector<8x1xf32>
    %67 = arith.divf %64, %66 : vector<8x1xf32>
    %68 = math.log %67 : vector<8x1xf32>
    %69 = arith.mulf %60, %68 : vector<8x1xf32>
    %cst_40 = arith.constant 1.000000e+00 : f32
    %70 = vector.broadcast %cst_40 : f32 to vector<8x1xf32>
    %71 = arith.subf %70, %60 : vector<8x1xf32>
    %cst_41 = arith.constant 1.000000e+00 : f32
    %72 = vector.broadcast %cst_41 : f32 to vector<8x1xf32>
    %73 = arith.subf %72, %60 : vector<8x1xf32>
    %cst_42 = arith.constant 1.000000e-10 : f32
    %74 = vector.broadcast %cst_42 : f32 to vector<8x1xf32>
    %75 = arith.addf %73, %74 : vector<8x1xf32>
    %cst_43 = arith.constant 1.000000e+00 : f32
    %76 = vector.broadcast %cst_43 : f32 to vector<8x1xf32>
    %77 = arith.subf %76, %59 : vector<8x1xf32>
    %cst_44 = arith.constant 1.000000e-10 : f32
    %78 = vector.broadcast %cst_44 : f32 to vector<8x1xf32>
    %79 = arith.addf %77, %78 : vector<8x1xf32>
    %80 = arith.divf %75, %79 : vector<8x1xf32>
    %81 = math.log %80 : vector<8x1xf32>
    %82 = arith.mulf %71, %81 : vector<8x1xf32>
    %83 = arith.addf %69, %82 : vector<8x1xf32>
    %84 = arith.mulf %83, %9 : vector<8x1xf32>
    %cst_45 = arith.constant dense<0.000000e+00> : vector<1xf32>
    %85 = vector.multi_reduction <add>, %84, %cst_45 [0] : vector<8x1xf32> to vector<1xf32>
    %86 = vector.shape_cast %85 : vector<1xf32> to vector<1x1xf32>
    %87 = arith.divf %86, %11 : vector<1x1xf32>
    %cst_46 = arith.constant 5.000000e-01 : f32
    %88 = vector.broadcast %cst_46 : f32 to vector<8x1xf32>
    %89 = arith.cmpf ogt, %62, %88 : vector<8x1xf32>
    %cst_47 = arith.constant 5.000000e-01 : f32
    %90 = vector.broadcast %cst_47 : f32 to vector<8x1xf32>
    %91 = arith.cmpf ogt, %9, %90 : vector<8x1xf32>
    %92 = arith.andi %89, %91 : vector<8x1xi1>
    %cst_48 = arith.constant 1.000000e+00 : f32
    %cst_49 = arith.constant 0.000000e+00 : f32
    %93 = vector.broadcast %cst_48 : f32 to vector<8x1xf32>
    %94 = vector.broadcast %cst_49 : f32 to vector<8x1xf32>
    %95 = arith.select %92, %93, %94 : vector<8x1xi1>, vector<8x1xf32>
    %cst_50 = arith.constant dense<0.000000e+00> : vector<1xf32>
    %96 = vector.multi_reduction <add>, %95, %cst_50 [0] : vector<8x1xf32> to vector<1xf32>
    %97 = vector.shape_cast %96 : vector<1xf32> to vector<1x1xf32>
    %cst_51 = arith.constant 1.000000e+00 : f32
    %98 = vector.broadcast %cst_51 : f32 to vector<1x1xf32>
    %99 = arith.addf %97, %98 : vector<1x1xf32>
    %100 = vector.broadcast %95 : vector<8x1xf32> to vector<8x32xf32>
    %101 = arith.mulf %2, %100 : vector<8x32xf32>
    %cst_52 = arith.constant dense<0.000000e+00> : vector<32xf32>
    %102 = vector.multi_reduction <add>, %101, %cst_52 [0] : vector<8x32xf32> to vector<32xf32>
    %103 = vector.shape_cast %102 : vector<32xf32> to vector<1x32xf32>
    %104 = vector.broadcast %99 : vector<1x1xf32> to vector<1x32xf32>
    %105 = arith.divf %103, %104 : vector<1x32xf32>
    %106 = arith.truncf %105 : vector<1x32xf32> to vector<1x32xbf16>
    %c0_53 = arith.constant 0 : index
    %c0_54 = arith.constant 0 : index
    %107 = vector.load %arg10[%c0_53, %c0_54] : memref<32x128xbf16, #tpu.memory_space<vmem>>, vector<32x128xbf16>
    %cst_55 = arith.constant dense<0.000000e+00> : vector<1x128xf32>
    %108 = tpu.matmul %106, %107, %cst_55 {dimension_numbers = #tpu.dot_dimension_numbers<[1], [0], [0], [1], [0, 0, 1, 1], [], []>} : vector<1x32xbf16>, vector<32x128xbf16>, vector<1x128xf32> -> vector<1x128xf32>
    %c0_56 = arith.constant 0 : index
    %c0_57 = arith.constant 0 : index
    %109 = vector.load %arg13[%c0_56, %c0_57] : memref<1x128xf32, #tpu.memory_space<vmem>>, vector<1x128xf32>
    %110 = arith.addf %108, %109 : vector<1x128xf32>
    %111 = vector.extract_strided_slice %110 {offsets = [0, 0], sizes = [1, 32], strides = [1, 1]} : vector<1x128xf32> to vector<1x32xf32>
    %112 = vector.extract_strided_slice %110 {offsets = [0, 32], sizes = [1, 32], strides = [1, 1]} : vector<1x128xf32> to vector<1x32xf32>
    %113 = vector.extract_strided_slice %110 {offsets = [0, 64], sizes = [1, 32], strides = [1, 1]} : vector<1x128xf32> to vector<1x32xf32>
    %114 = vector.extract_strided_slice %110 {offsets = [0, 96], sizes = [1, 32], strides = [1, 1]} : vector<1x128xf32> to vector<1x32xf32>
    %115 = arith.mulf %111, %5 : vector<1x32xf32>
    %cst_58 = arith.constant dense<0.000000e+00> : vector<1xf32>
    %116 = vector.multi_reduction <add>, %115, %cst_58 [1] : vector<1x32xf32> to vector<1xf32>
    %117 = vector.shape_cast %116 : vector<1xf32> to vector<1x1xf32>
    %118 = arith.mulf %112, %5 : vector<1x32xf32>
    %cst_59 = arith.constant dense<0.000000e+00> : vector<1xf32>
    %119 = vector.multi_reduction <add>, %118, %cst_59 [1] : vector<1x32xf32> to vector<1xf32>
    %120 = vector.shape_cast %119 : vector<1xf32> to vector<1x1xf32>
    %121 = arith.mulf %113, %5 : vector<1x32xf32>
    %cst_60 = arith.constant dense<0.000000e+00> : vector<1xf32>
    %122 = vector.multi_reduction <add>, %121, %cst_60 [1] : vector<1x32xf32> to vector<1xf32>
    %123 = vector.shape_cast %122 : vector<1xf32> to vector<1x1xf32>
    %124 = arith.mulf %114, %5 : vector<1x32xf32>
    %cst_61 = arith.constant dense<0.000000e+00> : vector<1xf32>
    %125 = vector.multi_reduction <add>, %124, %cst_61 [1] : vector<1x32xf32> to vector<1xf32>
    %126 = vector.shape_cast %125 : vector<1xf32> to vector<1x1xf32>
    %127 = tpu.concatenate %117, %120, %123, %126 in 1 : vector<1x1xf32>, vector<1x1xf32>, vector<1x1xf32>, vector<1x1xf32> -> vector<1x4xf32>
    %128 = arith.addf %127, %15 : vector<1x4xf32>
    %cst_62 = arith.constant 1.000000e+00 : f32
    %129 = vector.broadcast %cst_62 : f32 to vector<1x4xf32>
    %130 = arith.divf %128, %129 : vector<1x4xf32>
    %cst_63 = arith.constant dense<0xFF800000> : vector<1xf32>
    %131 = vector.multi_reduction <maximumf>, %130, %cst_63 [1] : vector<1x4xf32> to vector<1xf32>
    %132 = vector.shape_cast %131 : vector<1xf32> to vector<1x1xf32>
    %133 = vector.broadcast %132 : vector<1x1xf32> to vector<1x4xf32>
    %134 = arith.subf %130, %133 : vector<1x4xf32>
    %135 = math.exp %134 : vector<1x4xf32>
    %cst_64 = arith.constant dense<0.000000e+00> : vector<1xf32>
    %136 = vector.multi_reduction <add>, %135, %cst_64 [1] : vector<1x4xf32> to vector<1xf32>
    %137 = vector.shape_cast %136 : vector<1xf32> to vector<1x1xf32>
    %138 = vector.broadcast %137 : vector<1x1xf32> to vector<1x4xf32>
    %139 = arith.divf %135, %138 : vector<1x4xf32>
    %cst_65 = arith.constant dense<0xFF800000> : vector<1xf32>
    %140 = vector.multi_reduction <maximumf>, %139, %cst_65 [1] : vector<1x4xf32> to vector<1xf32>
    %141 = vector.shape_cast %140 : vector<1xf32> to vector<1x1xf32>
    %142 = tpu.iota {dimensions = array<i32: 1>} : vector<1x4xi32>
    %143 = vector.broadcast %141 : vector<1x1xf32> to vector<1x4xf32>
    %144 = arith.cmpf oeq, %139, %143 : vector<1x4xf32>
    %c4_i32 = arith.constant 4 : i32
    %145 = vector.broadcast %c4_i32 : i32 to vector<1x4xi32>
    %146 = arith.select %144, %142, %145 : vector<1x4xi1>, vector<1x4xi32>
    %cst_66 = arith.constant dense<2147483647> : vector<1xi32>
    %147 = vector.multi_reduction <minsi>, %146, %cst_66 [1] : vector<1x4xi32> to vector<1xi32>
    %148 = vector.shape_cast %147 : vector<1xi32> to vector<1x1xi32>
    %149 = vector.extract_strided_slice %139 {offsets = [0, 0], sizes = [1, 1], strides = [1, 1]} : vector<1x4xf32> to vector<1x1xf32>
    %150 = vector.broadcast %149 : vector<1x1xf32> to vector<1x32xf32>
    %151 = arith.mulf %111, %150 : vector<1x32xf32>
    %152 = vector.extract_strided_slice %139 {offsets = [0, 1], sizes = [1, 1], strides = [1, 1]} : vector<1x4xf32> to vector<1x1xf32>
    %153 = vector.broadcast %152 : vector<1x1xf32> to vector<1x32xf32>
    %154 = arith.mulf %112, %153 : vector<1x32xf32>
    %155 = arith.addf %151, %154 : vector<1x32xf32>
    %156 = vector.extract_strided_slice %139 {offsets = [0, 2], sizes = [1, 1], strides = [1, 1]} : vector<1x4xf32> to vector<1x1xf32>
    %157 = vector.broadcast %156 : vector<1x1xf32> to vector<1x32xf32>
    %158 = arith.mulf %113, %157 : vector<1x32xf32>
    %159 = arith.addf %155, %158 : vector<1x32xf32>
    %160 = vector.extract_strided_slice %139 {offsets = [0, 3], sizes = [1, 1], strides = [1, 1]} : vector<1x4xf32> to vector<1x1xf32>
    %161 = vector.broadcast %160 : vector<1x1xf32> to vector<1x32xf32>
    %162 = arith.mulf %114, %161 : vector<1x32xf32>
    %163 = arith.addf %159, %162 : vector<1x32xf32>
    %164 = arith.mulf %5, %6 : vector<1x32xf32>
    %cst_67 = arith.constant dense<0.000000e+00> : vector<1xf32>
    %165 = vector.multi_reduction <add>, %164, %cst_67 [1] : vector<1x32xf32> to vector<1xf32>
    %166 = vector.shape_cast %165 : vector<1xf32> to vector<1x1xf32>
    %167 = arith.mulf %5, %7 : vector<1x32xf32>
    %cst_68 = arith.constant dense<0.000000e+00> : vector<1xf32>
    %168 = vector.multi_reduction <add>, %167, %cst_68 [1] : vector<1x32xf32> to vector<1xf32>
    %169 = vector.shape_cast %168 : vector<1xf32> to vector<1x1xf32>
    %cst_69 = arith.constant 1.000000e+00 : f32
    %170 = vector.broadcast %cst_69 : f32 to vector<1x1xf32>
    %171 = arith.subf %170, %166 : vector<1x1xf32>
    %172 = arith.addf %171, %169 : vector<1x1xf32>
    %cst_70 = arith.constant 0.000000e+00 : f32
    %173 = vector.broadcast %cst_70 : f32 to vector<1x1xf32>
    %174 = arith.maximumf %172, %173 : vector<1x1xf32>
    %175 = arith.mulf %62, %9 : vector<8x1xf32>
    %cst_71 = arith.constant dense<0.000000e+00> : vector<1xf32>
    %176 = vector.multi_reduction <add>, %175, %cst_71 [0] : vector<8x1xf32> to vector<1xf32>
    %177 = vector.shape_cast %176 : vector<1xf32> to vector<1x1xf32>
    %178 = arith.divf %177, %11 : vector<1x1xf32>
    %179 = arith.mulf %61, %9 : vector<8x1xf32>
    %cst_72 = arith.constant dense<0.000000e+00> : vector<1xf32>
    %180 = vector.multi_reduction <add>, %179, %cst_72 [0] : vector<8x1xf32> to vector<1xf32>
    %181 = vector.shape_cast %180 : vector<1xf32> to vector<1x1xf32>
    %182 = arith.divf %181, %11 : vector<1x1xf32>
    %c0_73 = arith.constant 0 : index
    %c0_74 = arith.constant 0 : index
    %c0_75 = arith.constant 0 : index
    %183 = vector.load %arg14[%c0_73, %c0_74, %c0_75] : memref<1x8x2xf32, #tpu.memory_space<vmem>>, vector<1x8x2xf32>
    %184 = vector.shape_cast %183 : vector<1x8x2xf32> to vector<8x2xf32>
    %185 = vector.shape_cast %58 : vector<8x2xf32> to vector<1x8x2xf32>
    tpu.vector_store %arg14[%c0_73, %c0_74, %c0_75], %185 {strides = array<i32>} : memref<1x8x2xf32, #tpu.memory_space<vmem>>, vector<1x8x2xf32>,
    %c0_76 = arith.constant 0 : index
    %c0_77 = arith.constant 0 : index
    %c0_78 = arith.constant 0 : index
    %186 = vector.load %arg15[%c0_76, %c0_77, %c0_78] : memref<1x1x1xi32, #tpu.memory_space<vmem>>, vector<1x1x1xi32>
    %187 = vector.shape_cast %186 : vector<1x1x1xi32> to vector<1x1xi32>
    %188 = vector.shape_cast %148 : vector<1x1xi32> to vector<1x1x1xi32>
    tpu.vector_store %arg15[%c0_76, %c0_77, %c0_78], %188 {strides = array<i32>} : memref<1x1x1xi32, #tpu.memory_space<vmem>>, vector<1x1x1xi32>,
    %c0_79 = arith.constant 0 : index
    %c0_80 = arith.constant 0 : index
    %c0_81 = arith.constant 0 : index
    %189 = vector.load %arg16[%c0_79, %c0_80, %c0_81] : memref<1x1x32xf32, #tpu.memory_space<vmem>>, vector<1x1x32xf32>
    %190 = vector.shape_cast %189 : vector<1x1x32xf32> to vector<1x32xf32>
    %191 = vector.shape_cast %163 : vector<1x32xf32> to vector<1x1x32xf32>
    tpu.vector_store %arg16[%c0_79, %c0_80, %c0_81], %191 {strides = array<i32>} : memref<1x1x32xf32, #tpu.memory_space<vmem>>, vector<1x1x32xf32>,
    %192 = tpu.concatenate %174, %178, %182, %87 in 1 : vector<1x1xf32>, vector<1x1xf32>, vector<1x1xf32>, vector<1x1xf32> -> vector<1x4xf32>
    %c0_82 = arith.constant 0 : index
    %c0_83 = arith.constant 0 : index
    %c0_84 = arith.constant 0 : index
    %193 = vector.load %arg17[%c0_82, %c0_83, %c0_84] : memref<1x1x4xf32, #tpu.memory_space<vmem>>, vector<1x1x4xf32>
    %194 = vector.shape_cast %193 : vector<1x1x4xf32> to vector<1x4xf32>
    %195 = vector.shape_cast %192 : vector<1x4xf32> to vector<1x1x4xf32>
    tpu.vector_store %arg17[%c0_82, %c0_83, %c0_84], %195 {strides = array<i32>} : memref<1x1x4xf32, #tpu.memory_space<vmem>>, vector<1x1x4xf32>,
    return
  }
  func.func @transform_0(%arg0: i32) -> (i32, i32, i32) {
    %c0_i32 = arith.constant 0 : i32
    %c0_i32_0 = arith.constant 0 : i32
    %c0_i32_1 = arith.constant 0 : i32
    return %arg0, %c0_i32, %c0_i32_0 : i32, i32, i32
  }
  func.func @transform_1(%arg0: i32) -> (i32, i32, i32) {
    %c0_i32 = arith.constant 0 : i32
    %c0_i32_0 = arith.constant 0 : i32
    %c0_i32_1 = arith.constant 0 : i32
    return %arg0, %c0_i32, %c0_i32_0 : i32, i32, i32
  }
  func.func @transform_2(%arg0: i32) -> (i32, i32, i32) {
    %c0_i32 = arith.constant 0 : i32
    %c0_i32_0 = arith.constant 0 : i32
    %c0_i32_1 = arith.constant 0 : i32
    return %arg0, %c0_i32, %c0_i32_0 : i32, i32, i32
  }
  func.func @transform_3(%arg0: i32) -> (i32, i32, i32) {
    %c0_i32 = arith.constant 0 : i32
    %c0_i32_0 = arith.constant 0 : i32
    %c0_i32_1 = arith.constant 0 : i32
    return %arg0, %c0_i32, %c0_i32_0 : i32, i32, i32
  }
  func.func @transform_4(%arg0: i32) -> (i32, i32, i32) {
    %c0_i32 = arith.constant 0 : i32
    %c0_i32_0 = arith.constant 0 : i32
    %c0_i32_1 = arith.constant 0 : i32
    return %arg0, %c0_i32, %c0_i32_0 : i32, i32, i32
  }
  func.func @transform_5(%arg0: i32) -> (i32, i32, i32) {
    %c0_i32 = arith.constant 0 : i32
    %c0_i32_0 = arith.constant 0 : i32
    %c0_i32_1 = arith.constant 0 : i32
    return %arg0, %c0_i32, %c0_i32_0 : i32, i32, i32
  }
  func.func @transform_6(%arg0: i32) -> (i32, i32) {
    %c0_i32 = arith.constant 0 : i32
    %c0_i32_0 = arith.constant 0 : i32
    %c0_i32_1 = arith.constant 0 : i32
    return %c0_i32, %c0_i32_0 : i32, i32
  }
  func.func @transform_7(%arg0: i32) -> (i32, i32) {
    %c0_i32 = arith.constant 0 : i32
    %c0_i32_0 = arith.constant 0 : i32
    %c0_i32_1 = arith.constant 0 : i32
    return %c0_i32, %c0_i32_0 : i32, i32
  }
  func.func @transform_8(%arg0: i32) -> (i32, i32) {
    %c0_i32 = arith.constant 0 : i32
    %c0_i32_0 = arith.constant 0 : i32
    %c0_i32_1 = arith.constant 0 : i32
    return %c0_i32, %c0_i32_0 : i32, i32
  }
  func.func @transform_9(%arg0: i32) -> (i32, i32) {
    %c0_i32 = arith.constant 0 : i32
    %c0_i32_0 = arith.constant 0 : i32
    %c0_i32_1 = arith.constant 0 : i32
    return %c0_i32, %c0_i32_0 : i32, i32
  }
  func.func @transform_10(%arg0: i32) -> (i32, i32) {
    %c0_i32 = arith.constant 0 : i32
    %c0_i32_0 = arith.constant 0 : i32
    %c0_i32_1 = arith.constant 0 : i32
    return %c0_i32, %c0_i32_0 : i32, i32
  }
  func.func @transform_11(%arg0: i32) -> (i32, i32) {
    %c0_i32 = arith.constant 0 : i32
    %c0_i32_0 = arith.constant 0 : i32
    %c0_i32_1 = arith.constant 0 : i32
    return %c0_i32, %c0_i32_0 : i32, i32
  }
  func.func @transform_12(%arg0: i32) -> (i32, i32) {
    %c0_i32 = arith.constant 0 : i32
    %c0_i32_0 = arith.constant 0 : i32
    %c0_i32_1 = arith.constant 0 : i32
    return %c0_i32, %c0_i32_0 : i32, i32
  }
  func.func @transform_13(%arg0: i32) -> (i32, i32, i32) {
    %c0_i32 = arith.constant 0 : i32
    %c0_i32_0 = arith.constant 0 : i32
    %c0_i32_1 = arith.constant 0 : i32
    return %arg0, %c0_i32, %c0_i32_0 : i32, i32, i32
  }
  func.func @transform_14(%arg0: i32) -> (i32, i32, i32) {
    %c0_i32 = arith.constant 0 : i32
    %c0_i32_0 = arith.constant 0 : i32
    %c0_i32_1 = arith.constant 0 : i32
    return %arg0, %c0_i32, %c0_i32_0 : i32, i32, i32
  }
  func.func @transform_15(%arg0: i32) -> (i32, i32, i32) {
    %c0_i32 = arith.constant 0 : i32
    %c0_i32_0 = arith.constant 0 : i32
    %c0_i32_1 = arith.constant 0 : i32
    return %arg0, %c0_i32, %c0_i32_0 : i32, i32, i32
  }
  func.func @transform_16(%arg0: i32) -> (i32, i32, i32) {
    %c0_i32 = arith.constant 0 : i32
    %c0_i32_0 = arith.constant 0 : i32
    %c0_i32_1 = arith.constant 0 : i32
    return %arg0, %c0_i32, %c0_i32_0 : i32, i32, i32
  }
}

</mosaic_0001>

<llo_original>
// kernel: forward.3
$region0: #{forward.3}
  #allocation0 [shape = 'u32[]', space=smem, size = 0x4, offset = 0x4, fixed_abs, tag = 'smem constant byte address 0x4 - core index']
  #allocation1 [shape = 'u32[144,128]{1,0:T(1,128)}', space=vmem, size = 0x12000, scoped, tag = 'internal scratch']
  %s0 = inlined_call_operand.vmem [shape: bf16[2,8,32], index: 0, kind: input, shape index: {}]
  %s1 = inlined_call_operand.vmem [shape: f32[2,3,32], index: 1, kind: input, shape index: {}]
  %s2 = inlined_call_operand.vmem [shape: f32[2,8,1], index: 2, kind: input, shape index: {}]
  %s3 = inlined_call_operand.vmem [shape: f32[2,1,1], index: 3, kind: input, shape index: {}]
  %s4 = inlined_call_operand.vmem [shape: f32[2,8,2], index: 4, kind: input, shape index: {}]
  %s5 = inlined_call_operand.vmem [shape: f32[2,1,4], index: 5, kind: input, shape index: {}]
  %s6 = inlined_call_operand.vmem [shape: bf16[32,32], index: 6, kind: input, shape index: {}]
  %s7 = inlined_call_operand.vmem [shape: bf16[32,32], index: 7, kind: input, shape index: {}]
  %s8 = inlined_call_operand.vmem [shape: f32[2,32], index: 8, kind: input, shape index: {}]
  %s9 = inlined_call_operand.vmem [shape: bf16[32,128], index: 9, kind: input, shape index: {}]
  %s10 = inlined_call_operand.vmem [shape: f32[1,32], index: 10, kind: input, shape index: {}]
  %s11 = inlined_call_operand.vmem [shape: f32[1,2], index: 11, kind: input, shape index: {}]
  %s12 = inlined_call_operand.vmem [shape: f32[1,128], index: 12, kind: input, shape index: {}]
  %s13 = inlined_call_operand.vmem [shape: f32[2,8,2], index: 13, kind: output, shape index: {0}]
  %s14 = inlined_call_operand.vmem [shape: s32[2,1,1], index: 14, kind: output, shape index: {1}]
  %s15 = inlined_call_operand.hbm [shape: f32[2,1,32], index: 15, kind: output, shape index: {2}]
  %s16 = inlined_call_operand.vmem [shape: f32[2,1,4], index: 16, kind: output, shape index: {3}]
  %17 = xla_tuple %s13, %s14, %s15, %s16
  %s18 = sld [smem:[#allocation0]]
  $region109: #{forward.3} parent=0
    _
  %s20 = ssub.s32 1, %s18
  %s21 = scalar_select 0, %s20, %s18
  $region1: #{forward.3} parent=0
    #allocation2 [shape = 'u8[1024]{0}', space=vmem, size = 0x400, scoped, tag = 'output window, operand 2']
    #allocation3 [shape = 's32[2]{0}', space=sflag, size = 0x8, scoped, tag = 'scoped memory for forward.3']
    %22 = vsyncpa [#allocation3], 0
    %s23 = scalar_lea.sflag [#allocation3], 1
    %24 = vsyncpa %s23, 0
    loop: start=0, step=1, limit=4
    $region2: #{forward.3} parent=1 // loop_pre_header
      _
    $region3: #{forward.3} parent=1 // loop_header
      %s26 = sphi 0, %s30
      %p27 = scmp.ge.s32.totalorder %s26, 4
      %s36 = sphi 0, %s38
      %s39 = sphi 0, %s36
      %s40 = sphi 0, %s39
      %s56 = sphi 0, %s40
      %s62 = sphi 0, %s64
      %s65 = sphi 0, %s62
      %s66 = sphi 0, %s65
      %s82 = sphi 0, %s66
      %s88 = sphi 0, %s90
      %s91 = sphi 0, %s88
      %s92 = sphi 0, %s91
      %s108 = sphi 0, %s92
      %s114 = sphi 0, %s116
      %s117 = sphi 0, %s114
      %s118 = sphi 0, %s117
      %s134 = sphi 0, %s118
      %s140 = sphi 0, %s142
      %s143 = sphi 0, %s140
      %s144 = sphi 0, %s143
      %s160 = sphi 0, %s144
      %s166 = sphi 0, %s168
      %s169 = sphi 0, %s166
      %s170 = sphi 0, %s169
      %s186 = sphi 0, %s170
      %s190 = sphi 0, %s190
      %s192 = sphi 0, %s190
      %s193 = sphi 0, %s192
      %s207 = sphi 0, %s193
      %s211 = sphi 0, %s211
      %s213 = sphi 0, %s211
      %s214 = sphi 0, %s213
      %s228 = sphi 0, %s214
      %s232 = sphi 0, %s232
      %s234 = sphi 0, %s232
      %s235 = sphi 0, %s234
      %s249 = sphi 0, %s235
      %s253 = sphi 0, %s253
      %s255 = sphi 0, %s253
      %s256 = sphi 0, %s255
      %s270 = sphi 0, %s256
      %s274 = sphi 0, %s274
      %s276 = sphi 0, %s274
      %s277 = sphi 0, %s276
      %s291 = sphi 0, %s277
      %s295 = sphi 0, %s295
      %s297 = sphi 0, %s295
      %s298 = sphi 0, %s297
      %s312 = sphi 0, %s298
      %s316 = sphi 0, %s316
      %s318 = sphi 0, %s316
      %s319 = sphi 0, %s318
      %s333 = sphi 0, %s319
      %s339 = sphi 0, %s341
      %s342 = sphi 0, %s339
      %s343 = sphi 0, %s342
      %s359 = sphi 0, %s343
      %s365 = sphi 0, %s367
      %s368 = sphi 0, %s365
      %s369 = sphi 0, %s368
      %s385 = sphi 0, %s369
      %s391 = sphi 0, %s393
      %s394 = sphi 0, %s391
      %s395 = sphi 0, %s394
      %s411 = sphi 0, %s395
      %s417 = sphi 0, %s419
      %s420 = sphi 0, %s417
      %s421 = sphi 0, %s420
      %s437 = sphi 0, %s421
    $region4: #{forward.3} parent=1 // loop_header_branch
      %29 = sbr.rel (%p27) target = $region8
    $region5: #{forward.3} parent=1 // loop_body
      %s31 = ssub.s32 %s26, 1
      %s32 = ssub.s32 %s26, 2
      %s33 = sadd.s32 %s26, 1
      %s34 = ssub.s32 %s26, %s33
      %p35 = scmp.eq.s32.totalorder %s34, 0
      %s37 = sadd.s32 %s36, 1
      %s38 = scalar_select %p35, %s36, %s37
      %p41 = pneg %p35
      %p42 = scmp.eq.s32.totalorder %s26, 1
      %p43 = por %p41, %p42
      %p44 = scmp.ne.s32.totalorder %s36, %s39
      %p45 = scmp.eq.s32.totalorder %s26, 0
      %p46 = por %p44, %p45
      %p47 = scmp.ne.s32.totalorder %s36, %s39
      %p48 = scmp.eq.s32.totalorder %s31, 1
      %p49 = por %p47, %p48
      %p50 = scmp.ne.s32.totalorder %s39, %s40
      %p51 = scmp.eq.s32.totalorder %s31, 0
      %p52 = por %p50, %p51
      %p53 = scmp.ne.s32.totalorder %s39, %s40
      %p54 = scmp.eq.s32.totalorder %s32, 1
      %p55 = por %p53, %p54
      %p57 = scmp.ne.s32.totalorder %s40, %s56
      %p58 = scmp.eq.s32.totalorder %s32, 0
      %p59 = por %p57, %p58
      %s60 = ssub.s32 %s26, %s33
      %p61 = scmp.eq.s32.totalorder %s60, 0
      %s63 = sadd.s32 %s62, 1
      %s64 = scalar_select %p61, %s62, %s63
      %p67 = pneg %p61
      %p68 = scmp.eq.s32.totalorder %s26, 1
      %p69 = por %p67, %p68
      %p70 = scmp.ne.s32.totalorder %s62, %s65
      %p71 = scmp.eq.s32.totalorder %s26, 0
      %p72 = por %p70, %p71
      %p73 = scmp.ne.s32.totalorder %s62, %s65
      %p74 = scmp.eq.s32.totalorder %s31, 1
      %p75 = por %p73, %p74
      %p76 = scmp.ne.s32.totalorder %s65, %s66
      %p77 = scmp.eq.s32.totalorder %s31, 0
      %p78 = por %p76, %p77
      %p79 = scmp.ne.s32.totalorder %s65, %s66
      %p80 = scmp.eq.s32.totalorder %s32, 1
      %p81 = por %p79, %p80
      %p83 = scmp.ne.s32.totalorder %s66, %s82
      %p84 = scmp.eq.s32.totalorder %s32, 0
      %p85 = por %p83, %p84
      %s86 = ssub.s32 %s26, %s33
      %p87 = scmp.eq.s32.totalorder %s86, 0
      %s89 = sadd.s32 %s88, 1
      %s90 = scalar_select %p87, %s88, %s89
      %p93 = pneg %p87
      %p94 = scmp.eq.s32.totalorder %s26, 1
      %p95 = por %p93, %p94
      %p96 = scmp.ne.s32.totalorder %s88, %s91
      %p97 = scmp.eq.s32.totalorder %s26, 0
      %p98 = por %p96, %p97
      %p99 = scmp.ne.s32.totalorder %s88, %s91
      %p100 = scmp.eq.s32.totalorder %s31, 1
      %p101 = por %p99, %p100
      %p102 = scmp.ne.s32.totalorder %s91, %s92
      %p103 = scmp.eq.s32.totalorder %s31, 0
      %p104 = por %p102, %p103
      %p105 = scmp.ne.s32.totalorder %s91, %s92
      %p106 = scmp.eq.s32.totalorder %s32, 1
      %p107 = por %p105, %p106
      %p109 = scmp.ne.s32.totalorder %s92, %s108
      %p110 = scmp.eq.s32.totalorder %s32, 0
      %p111 = por %p109, %p110
      %s112 = ssub.s32 %s26, %s33
      %p113 = scmp.eq.s32.totalorder %s112, 0
      %s115 = sadd.s32 %s114, 1
      %s116 = scalar_select %p113, %s114, %s115
      %p119 = pneg %p113
      %p120 = scmp.eq.s32.totalorder %s26, 1
      %p121 = por %p119, %p120
      %p122 = scmp.ne.s32.totalorder %s114, %s117
      %p123 = scmp.eq.s32.totalorder %s26, 0
      %p124 = por %p122, %p123
      %p125 = scmp.ne.s32.totalorder %s114, %s117
      %p126 = scmp.eq.s32.totalorder %s31, 1
      %p127 = por %p125, %p126
      %p128 = scmp.ne.s32.totalorder %s117, %s118
      %p129 = scmp.eq.s32.totalorder %s31, 0
      %p130 = por %p128, %p129
      %p131 = scmp.ne.s32.totalorder %s117, %s118
      %p132 = scmp.eq.s32.totalorder %s32, 1
      %p133 = por %p131, %p132
      %p135 = scmp.ne.s32.totalorder %s118, %s134
      %p136 = scmp.eq.s32.totalorder %s32, 0
      %p137 = por %p135, %p136
      %s138 = ssub.s32 %s26, %s33
      %p139 = scmp.eq.s32.totalorder %s138, 0
      %s141 = sadd.s32 %s140, 1
      %s142 = scalar_select %p139, %s140, %s141
      %p145 = pneg %p139
      %p146 = scmp.eq.s32.totalorder %s26, 1
      %p147 = por %p145, %p146
      %p148 = scmp.ne.s32.totalorder %s140, %s143
      %p149 = scmp.eq.s32.totalorder %s26, 0
      %p150 = por %p148, %p149
      %p151 = scmp.ne.s32.totalorder %s140, %s143
      %p152 = scmp.eq.s32.totalorder %s31, 1
      %p153 = por %p151, %p152
      %p154 = scmp.ne.s32.totalorder %s143, %s144
      %p155 = scmp.eq.s32.totalorder %s31, 0
      %p156 = por %p154, %p155
      %p157 = scmp.ne.s32.totalorder %s143, %s144
      %p158 = scmp.eq.s32.totalorder %s32, 1
      %p159 = por %p157, %p158
      %p161 = scmp.ne.s32.totalorder %s144, %s160
      %p162 = scmp.eq.s32.totalorder %s32, 0
      %p163 = por %p161, %p162
      %s164 = ssub.s32 %s26, %s33
      %p165 = scmp.eq.s32.totalorder %s164, 0
      %s167 = sadd.s32 %s166, 1
      %s168 = scalar_select %p165, %s166, %s167
      %p171 = pneg %p165
      %p172 = scmp.eq.s32.totalorder %s26, 1
      %p173 = por %p171, %p172
      %p174 = scmp.ne.s32.totalorder %s166, %s169
      %p175 = scmp.eq.s32.totalorder %s26, 0
      %p176 = por %p174, %p175
      %p177 = scmp.ne.s32.totalorder %s166, %s169
      %p178 = scmp.eq.s32.totalorder %s31, 1
      %p179 = por %p177, %p178
      %p180 = scmp.ne.s32.totalorder %s169, %s170
      %p181 = scmp.eq.s32.totalorder %s31, 0
      %p182 = por %p180, %p181
      %p183 = scmp.ne.s32.totalorder %s169, %s170
      %p184 = scmp.eq.s32.totalorder %s32, 1
      %p185 = por %p183, %p184
      %p187 = scmp.ne.s32.totalorder %s170, %s186
      %p188 = scmp.eq.s32.totalorder %s32, 0
      %p189 = por %p187, %p188
      %s191 = sadd.s32 %s190, 1
      %p194 = scmp.eq.s32.totalorder %s26, 1
      %p195 = scmp.ne.s32.totalorder %s190, %s192
      %p196 = scmp.eq.s32.totalorder %s26, 0
      %p197 = por %p195, %p196
      %p198 = scmp.ne.s32.totalorder %s190, %s192
      %p199 = scmp.eq.s32.totalorder %s31, 1
      %p200 = por %p198, %p199
      %p201 = scmp.ne.s32.totalorder %s192, %s193
      %p202 = scmp.eq.s32.totalorder %s31, 0
      %p203 = por %p201, %p202
      %p204 = scmp.ne.s32.totalorder %s192, %s193
      %p205 = scmp.eq.s32.totalorder %s32, 1
      %p206 = por %p204, %p205
      %p208 = scmp.ne.s32.totalorder %s193, %s207
      %p209 = scmp.eq.s32.totalorder %s32, 0
      %p210 = por %p208, %p209
      %s212 = sadd.s32 %s211, 1
      %p215 = scmp.eq.s32.totalorder %s26, 1
      %p216 = scmp.ne.s32.totalorder %s211, %s213
      %p217 = scmp.eq.s32.totalorder %s26, 0
      %p218 = por %p216, %p217
      %p219 = scmp.ne.s32.totalorder %s211, %s213
      %p220 = scmp.eq.s32.totalorder %s31, 1
      %p221 = por %p219, %p220
      %p222 = scmp.ne.s32.totalorder %s213, %s214
      %p223 = scmp.eq.s32.totalorder %s31, 0
      %p224 = por %p222, %p223
      %p225 = scmp.ne.s32.totalorder %s213, %s214
      %p226 = scmp.eq.s32.totalorder %s32, 1
      %p227 = por %p225, %p226
      %p229 = scmp.ne.s32.totalorder %s214, %s228
      %p230 = scmp.eq.s32.totalorder %s32, 0
      %p231 = por %p229, %p230
      %s233 = sadd.s32 %s232, 1
      %p236 = scmp.eq.s32.totalorder %s26, 1
      %p237 = scmp.ne.s32.totalorder %s232, %s234
      %p238 = scmp.eq.s32.totalorder %s26, 0
      %p239 = por %p237, %p238
      %p240 = scmp.ne.s32.totalorder %s232, %s234
      %p241 = scmp.eq.s32.totalorder %s31, 1
      %p242 = por %p240, %p241
      %p243 = scmp.ne.s32.totalorder %s234, %s235
      %p244 = scmp.eq.s32.totalorder %s31, 0
      %p245 = por %p243, %p244
      %p246 = scmp.ne.s32.totalorder %s234, %s235
      %p247 = scmp.eq.s32.totalorder %s32, 1
      %p248 = por %p246, %p247
      %p250 = scmp.ne.s32.totalorder %s235, %s249
      %p251 = scmp.eq.s32.totalorder %s32, 0
      %p252 = por %p250, %p251
      %s254 = sadd.s32 %s253, 1
      %p257 = scmp.eq.s32.totalorder %s26, 1
      %p258 = scmp.ne.s32.totalorder %s253, %s255
      %p259 = scmp.eq.s32.totalorder %s26, 0
      %p260 = por %p258, %p259
      %p261 = scmp.ne.s32.totalorder %s253, %s255
      %p262 = scmp.eq.s32.totalorder %s31, 1
      %p263 = por %p261, %p262
      %p264 = scmp.ne.s32.totalorder %s255, %s256
      %p265 = scmp.eq.s32.totalorder %s31, 0
      %p266 = por %p264, %p265
      %p267 = scmp.ne.s32.totalorder %s255, %s256
      %p268 = scmp.eq.s32.totalorder %s32, 1
      %p269 = por %p267, %p268
      %p271 = scmp.ne.s32.totalorder %s256, %s270
      %p272 = scmp.eq.s32.totalorder %s32, 0
      %p273 = por %p271, %p272
      %s275 = sadd.s32 %s274, 1
      %p278 = scmp.eq.s32.totalorder %s26, 1
      %p279 = scmp.ne.s32.totalorder %s274, %s276
      %p280 = scmp.eq.s32.totalorder %s26, 0
      %p281 = por %p279, %p280
      %p282 = scmp.ne.s32.totalorder %s274, %s276
      %p283 = scmp.eq.s32.totalorder %s31, 1
      %p284 = por %p282, %p283
      %p285 = scmp.ne.s32.totalorder %s276, %s277
      %p286 = scmp.eq.s32.totalorder %s31, 0
      %p287 = por %p285, %p286
      %p288 = scmp.ne.s32.totalorder %s276, %s277
      %p289 = scmp.eq.s32.totalorder %s32, 1
      %p290 = por %p288, %p289
      %p292 = scmp.ne.s32.totalorder %s277, %s291
      %p293 = scmp.eq.s32.totalorder %s32, 0
      %p294 = por %p292, %p293
      %s296 = sadd.s32 %s295, 1
      %p299 = scmp.eq.s32.totalorder %s26, 1
      %p300 = scmp.ne.s32.totalorder %s295, %s297
      %p301 = scmp.eq.s32.totalorder %s26, 0
      %p302 = por %p300, %p301
      %p303 = scmp.ne.s32.totalorder %s295, %s297
      %p304 = scmp.eq.s32.totalorder %s31, 1
      %p305 = por %p303, %p304
      %p306 = scmp.ne.s32.totalorder %s297, %s298
      %p307 = scmp.eq.s32.totalorder %s31, 0
      %p308 = por %p306, %p307
      %p309 = scmp.ne.s32.totalorder %s297, %s298
      %p310 = scmp.eq.s32.totalorder %s32, 1
      %p311 = por %p309, %p310
      %p313 = scmp.ne.s32.totalorder %s298, %s312
      %p314 = scmp.eq.s32.totalorder %s32, 0
      %p315 = por %p313, %p314
      %s317 = sadd.s32 %s316, 1
      %p320 = scmp.eq.s32.totalorder %s26, 1
      %p321 = scmp.ne.s32.totalorder %s316, %s318
      %p322 = scmp.eq.s32.totalorder %s26, 0
      %p323 = por %p321, %p322
      %p324 = scmp.ne.s32.totalorder %s316, %s318
      %p325 = scmp.eq.s32.totalorder %s31, 1
      %p326 = por %p324, %p325
      %p327 = scmp.ne.s32.totalorder %s318, %s319
      %p328 = scmp.eq.s32.totalorder %s31, 0
      %p329 = por %p327, %p328
      %p330 = scmp.ne.s32.totalorder %s318, %s319
      %p331 = scmp.eq.s32.totalorder %s32, 1
      %p332 = por %p330, %p331
      %p334 = scmp.ne.s32.totalorder %s319, %s333
      %p335 = scmp.eq.s32.totalorder %s32, 0
      %p336 = por %p334, %p335
      %s337 = ssub.s32 %s26, %s33
      %p338 = scmp.eq.s32.totalorder %s337, 0
      %s340 = sadd.s32 %s339, 1
      %s341 = scalar_select %p338, %s339, %s340
      %p344 = pneg %p338
      %p345 = scmp.eq.s32.totalorder %s26, 1
      %p346 = por %p344, %p345
      %p347 = scmp.ne.s32.totalorder %s339, %s342
      %p348 = scmp.eq.s32.totalorder %s26, 0
      %p349 = por %p347, %p348
      %p350 = scmp.ne.s32.totalorder %s339, %s342
      %p351 = scmp.eq.s32.totalorder %s31, 1
      %p352 = por %p350, %p351
      %p353 = scmp.ne.s32.totalorder %s342, %s343
      %p354 = scmp.eq.s32.totalorder %s31, 0
      %p355 = por %p353, %p354
      %p356 = scmp.ne.s32.totalorder %s342, %s343
      %p357 = scmp.eq.s32.totalorder %s32, 1
      %p358 = por %p356, %p357
      %p360 = scmp.ne.s32.totalorder %s343, %s359
      %p361 = scmp.eq.s32.totalorder %s32, 0
      %p362 = por %p360, %p361
      %s363 = ssub.s32 %s26, %s33
      %p364 = scmp.eq.s32.totalorder %s363, 0
      %s366 = sadd.s32 %s365, 1
      %s367 = scalar_select %p364, %s365, %s366
      %p370 = pneg %p364
      %p371 = scmp.eq.s32.totalorder %s26, 1
      %p372 = por %p370, %p371
      %p373 = scmp.ne.s32.totalorder %s365, %s368
      %p374 = scmp.eq.s32.totalorder %s26, 0
      %p375 = por %p373, %p374
      %p376 = scmp.ne.s32.totalorder %s365, %s368
      %p377 = scmp.eq.s32.totalorder %s31, 1
      %p378 = por %p376, %p377
      %p379 = scmp.ne.s32.totalorder %s368, %s369
      %p380 = scmp.eq.s32.totalorder %s31, 0
      %p381 = por %p379, %p380
      %p382 = scmp.ne.s32.totalorder %s368, %s369
      %p383 = scmp.eq.s32.totalorder %s32, 1
      %p384 = por %p382, %p383
      %p386 = scmp.ne.s32.totalorder %s369, %s385
      %p387 = scmp.eq.s32.totalorder %s32, 0
      %p388 = por %p386, %p387
      %s389 = ssub.s32 %s26, %s33
      %p390 = scmp.eq.s32.totalorder %s389, 0
      %s392 = sadd.s32 %s391, 1
      %s393 = scalar_select %p390, %s391, %s392
      %p396 = pneg %p390
      %p397 = scmp.eq.s32.totalorder %s26, 1
      %p398 = por %p396, %p397
      %p399 = scmp.ne.s32.totalorder %s391, %s394
      %p400 = scmp.eq.s32.totalorder %s26, 0
      %p401 = por %p399, %p400
      %p402 = scmp.ne.s32.totalorder %s391, %s394
      %p403 = scmp.eq.s32.totalorder %s31, 1
      %p404 = por %p402, %p403
      %p405 = scmp.ne.s32.totalorder %s394, %s395
      %p406 = scmp.eq.s32.totalorder %s31, 0
      %p407 = por %p405, %p406
      %p408 = scmp.ne.s32.totalorder %s394, %s395
      %p409 = scmp.eq.s32.totalorder %s32, 1
      %p410 = por %p408, %p409
      %p412 = scmp.ne.s32.totalorder %s395, %s411
      %p413 = scmp.eq.s32.totalorder %s32, 0
      %p414 = por %p412, %p413
      %s415 = ssub.s32 %s26, %s33
      %p416 = scmp.eq.s32.totalorder %s415, 0
      %s418 = sadd.s32 %s417, 1
      %s419 = scalar_select %p416, %s417, %s418
      %p422 = pneg %p416
      %p423 = scmp.eq.s32.totalorder %s26, 1
      %p424 = por %p422, %p423
      %p425 = scmp.ne.s32.totalorder %s417, %s420
      %p426 = scmp.eq.s32.totalorder %s26, 0
      %p427 = por %p425, %p426
      %p428 = scmp.ne.s32.totalorder %s417, %s420
      %p429 = scmp.eq.s32.totalorder %s31, 1
      %p430 = por %p428, %p429
      %p431 = scmp.ne.s32.totalorder %s420, %s421
      %p432 = scmp.eq.s32.totalorder %s31, 0
      %p433 = por %p431, %p432
      %p434 = scmp.ne.s32.totalorder %s420, %s421
      %p435 = scmp.eq.s32.totalorder %s32, 1
      %p436 = por %p434, %p435
      %p438 = scmp.ne.s32.totalorder %s421, %s437
      %p439 = scmp.eq.s32.totalorder %s32, 0
      %p440 = por %p438, %p439
      %p441 = scmp.le.s32.totalorder 1, %s26
      %p442 = scmp.lt.s32.totalorder %s26, 3
      %p443 = pnand %p441, %p442
      %p444 = pneg %p443
      // Predicated region
      $region9: #{forward.3} parent=5 // pred_check
        _
      $region10: #{forward.3} parent=5 // pred_check_branch
        %446 = sbr.rel (%p443) target = $region12
      $region11: #{forward.3} parent=5 // pred_region
        %s447 = ssub.s32 %s26, 1
        // Predicated region
        $region13: #{forward.3} parent=11 // pred_check
          %p448 = pneg %p203
        $region14: #{forward.3} parent=11 // pred_check_branch
          %450 = sbr.rel (%p448) target = $region16
        $region15: #{forward.3} parent=11 // pred_region
          _
        $region16: #{forward.3} parent=11 // pred_fallthru
          _
        // Predicated region
        $region17: #{forward.3} parent=11 // pred_check
          %p451 = pneg %p224
        $region18: #{forward.3} parent=11 // pred_check_branch
          %453 = sbr.rel (%p451) target = $region20
        $region19: #{forward.3} parent=11 // pred_region
          _
        $region20: #{forward.3} parent=11 // pred_fallthru
          _
        // Predicated region
        $region21: #{forward.3} parent=11 // pred_check
          %p454 = pneg %p245
        $region22: #{forward.3} parent=11 // pred_check_branch
          %456 = sbr.rel (%p454) target = $region24
        $region23: #{forward.3} parent=11 // pred_region
          _
        $region24: #{forward.3} parent=11 // pred_fallthru
          _
        // Predicated region
        $region25: #{forward.3} parent=11 // pred_check
          %p457 = pneg %p266
        $region26: #{forward.3} parent=11 // pred_check_branch
          %459 = sbr.rel (%p457) target = $region28
        $region27: #{forward.3} parent=11 // pred_region
          _
        $region28: #{forward.3} parent=11 // pred_fallthru
          _
        // Predicated region
        $region29: #{forward.3} parent=11 // pred_check
          %p460 = pneg %p287
        $region30: #{forward.3} parent=11 // pred_check_branch
          %462 = sbr.rel (%p460) target = $region32
        $region31: #{forward.3} parent=11 // pred_region
          _
        $region32: #{forward.3} parent=11 // pred_fallthru
          _
        // Predicated region
        $region33: #{forward.3} parent=11 // pred_check
          %p463 = pneg %p308
        $region34: #{forward.3} parent=11 // pred_check_branch
          %465 = sbr.rel (%p463) target = $region36
        $region35: #{forward.3} parent=11 // pred_region
          _
        $region36: #{forward.3} parent=11 // pred_fallthru
          _
        // Predicated region
        $region37: #{forward.3} parent=11 // pred_check
          %p466 = pneg %p329
        $region38: #{forward.3} parent=11 // pred_check_branch
          %468 = sbr.rel (%p466) target = $region40
        $region39: #{forward.3} parent=11 // pred_region
          _
        $region40: #{forward.3} parent=11 // pred_fallthru
          _
      $region12: #{forward.3} parent=5 // pred_fallthru
        _
      %p469 = scmp.lt.s32.totalorder %s26, 2
      // Predicated region
      $region41: #{forward.3} parent=5 // pred_check
        %p470 = pneg %p469
      $region42: #{forward.3} parent=5 // pred_check_branch
        %472 = sbr.rel (%p470) target = $region44
      $region43: #{forward.3} parent=5 // pred_region
        // Predicated region
        $region45: #{forward.3} parent=43 // pred_check
          %p473 = pneg %p46
        $region46: #{forward.3} parent=43 // pred_check_branch
          %475 = sbr.rel (%p473) target = $region48
        $region47: #{forward.3} parent=43 // pred_region
          %p476 = scmp.lt.s32.totalorder %s26, 1
          %s477 = scalar_select %p476, %s26, 1
          %s478 = smul.addr %s477, 4
          %s479 = scalar_lea.vmem %s0, %s478
        $region48: #{forward.3} parent=43 // pred_fallthru
          _
        // Predicated region
        $region49: #{forward.3} parent=43 // pred_check
          %p480 = pneg %p72
        $region50: #{forward.3} parent=43 // pred_check_branch
          %482 = sbr.rel (%p480) target = $region52
        $region51: #{forward.3} parent=43 // pred_region
          %p483 = scmp.lt.s32.totalorder %s26, 1
          %s484 = scalar_select %p483, %s26, 1
          %s485 = smul.addr %s484, 4
          %s486 = scalar_lea.vmem %s1, %s485
        $region52: #{forward.3} parent=43 // pred_fallthru
          _
        // Predicated region
        $region53: #{forward.3} parent=43 // pred_check
          %p487 = pneg %p98
        $region54: #{forward.3} parent=43 // pred_check_branch
          %489 = sbr.rel (%p487) target = $region56
        $region55: #{forward.3} parent=43 // pred_region
          %p490 = scmp.lt.s32.totalorder %s26, 1
          %s491 = scalar_select %p490, %s26, 1
          %s492 = smul.addr %s491, 8
          %s493 = scalar_lea.vmem %s2, %s492
        $region56: #{forward.3} parent=43 // pred_fallthru
          _
        // Predicated region
        $region57: #{forward.3} parent=43 // pred_check
          %p494 = pneg %p124
        $region58: #{forward.3} parent=43 // pred_check_branch
          %496 = sbr.rel (%p494) target = $region60
        $region59: #{forward.3} parent=43 // pred_region
          %p497 = scmp.lt.s32.totalorder %s26, 1
          %s498 = scalar_select %p497, %s26, 1
          %s499 = scalar_lea.vmem %s3, %s498
        $region60: #{forward.3} parent=43 // pred_fallthru
          _
        // Predicated region
        $region61: #{forward.3} parent=43 // pred_check
          %p500 = pneg %p150
        $region62: #{forward.3} parent=43 // pred_check_branch
          %502 = sbr.rel (%p500) target = $region64
        $region63: #{forward.3} parent=43 // pred_region
          %p503 = scmp.lt.s32.totalorder %s26, 1
          %s504 = scalar_select %p503, %s26, 1
          %s505 = smul.addr %s504, 8
          %s506 = scalar_lea.vmem %s4, %s505
        $region64: #{forward.3} parent=43 // pred_fallthru
          _
        // Predicated region
        $region65: #{forward.3} parent=43 // pred_check
          %p507 = pneg %p176
        $region66: #{forward.3} parent=43 // pred_check_branch
          %509 = sbr.rel (%p507) target = $region68
        $region67: #{forward.3} parent=43 // pred_region
          %p510 = scmp.lt.s32.totalorder %s26, 1
          %s511 = scalar_select %p510, %s26, 1
          %s512 = scalar_lea.vmem %s5, %s511
        $region68: #{forward.3} parent=43 // pred_fallthru
          _
      $region44: #{forward.3} parent=5 // pred_fallthru
        _
      %p513 = scmp.le.s32.totalorder 1, %s26
      %p514 = scmp.lt.s32.totalorder %s26, 3
      %p515 = pnand %p513, %p514
      %p516 = pneg %p515
      // Predicated region
      $region69: #{forward.3} parent=5 // pred_check
        _
      $region70: #{forward.3} parent=5 // pred_check_branch
        %518 = sbr.rel (%p515) target = $region72
      $region71: #{forward.3} parent=5 // pred_region
        %s519 = ssub.s32 %s26, 1
        %p520 = scmp.lt.s32.totalorder %s31, 1
        %s521 = scalar_select %p520, %s31, 1
        %s522 = smul.addr %s521, 4
        %s523 = scalar_lea.vmem %s0, %s522
        %p524 = pneg %p52
        %p525 = pneg %p49
        %p526 = scmp.lt.s32.totalorder %s31, 1
        %s527 = scalar_select %p526, %s31, 1
        %s528 = smul.addr %s527, 4
        %s529 = scalar_lea.vmem %s1, %s528
        %p530 = pneg %p78
        %p531 = pneg %p75
        %p532 = scmp.lt.s32.totalorder %s31, 1
        %s533 = scalar_select %p532, %s31, 1
        %s534 = smul.addr %s533, 8
        %s535 = scalar_lea.vmem %s2, %s534
        %p536 = pneg %p104
        %p537 = pneg %p101
        %p538 = scmp.lt.s32.totalorder %s31, 1
        %s539 = scalar_select %p538, %s31, 1
        %s540 = scalar_lea.vmem %s3, %s539
        %p541 = pneg %p130
        %p542 = pneg %p127
        %p543 = scmp.lt.s32.totalorder %s31, 1
        %s544 = scalar_select %p543, %s31, 1
        %s545 = smul.addr %s544, 8
        %s546 = scalar_lea.vmem %s4, %s545
        %p547 = pneg %p156
        %p548 = pneg %p153
        %p549 = scmp.lt.s32.totalorder %s31, 1
        %s550 = scalar_select %p549, %s31, 1
        %s551 = scalar_lea.vmem %s5, %s550
        %p552 = pneg %p182
        %p553 = pneg %p179
        %p554 = pneg %p203
        %p555 = pneg %p200
        %p556 = pneg %p224
        %p557 = pneg %p221
        %p558 = pneg %p245
        %p559 = pneg %p242
        %p560 = pneg %p266
        %p561 = pneg %p263
        %p562 = pneg %p287
        %p563 = pneg %p284
        %p564 = pneg %p308
        %p565 = pneg %p305
        %p566 = pneg %p329
        %p567 = pneg %p326
        %p568 = pneg %p355
        %p569 = pneg %p352
        %p570 = scmp.lt.s32.totalorder %s31, 1
        %s571 = scalar_select %p570, %s31, 1
        %s572 = smul.addr %s571, 8
        %s573 = scalar_lea.vmem %s13, %s572
        %p574 = pneg %p381
        %p575 = pneg %p378
        %p576 = scmp.lt.s32.totalorder %s31, 1
        %s577 = scalar_select %p576, %s31, 1
        %s578 = scalar_lea.vmem %s14, %s577
        %p579 = pneg %p407
        %p580 = pneg %p404
        %s581 = sand.u32 %s394, 1
        %s582 = scalar_lea.sflag [#allocation3], %s581
        %s583 = sand.u32 %s394, 1
        %s584 = scalar_lea.vmem [#allocation2], %s583
        %p585 = pneg %p433
        %p586 = pneg %p430
        %p587 = scmp.lt.s32.totalorder %s31, 1
        %s588 = scalar_select %p587, %s31, 1
        %s589 = scalar_lea.vmem %s16, %s588
        %p590 = scmp.lt.s32.totalorder %s31, 1
        %s591 = scalar_select %p590, %s31, 1
        %s592 = smul.addr %s591, 4
        %s593 = scalar_lea.vmem %s0, %s592
        %p594 = scmp.lt.s32.totalorder %s31, 1
        %s595 = scalar_select %p594, %s31, 1
        %s596 = smul.addr %s595, 4
        %s597 = scalar_lea.vmem %s1, %s596
        %p598 = scmp.lt.s32.totalorder %s31, 1
        %s599 = scalar_select %p598, %s31, 1
        %s600 = smul.addr %s599, 8
        %s601 = scalar_lea.vmem %s2, %s600
        %p602 = scmp.lt.s32.totalorder %s31, 1
        %s603 = scalar_select %p602, %s31, 1
        %s604 = scalar_lea.vmem %s3, %s603
        %p605 = scmp.lt.s32.totalorder %s31, 1
        %s606 = scalar_select %p605, %s31, 1
        %s607 = smul.addr %s606, 8
        %s608 = scalar_lea.vmem %s4, %s607
        %p609 = scmp.lt.s32.totalorder %s31, 1
        %s610 = scalar_select %p609, %s31, 1
        %s611 = scalar_lea.vmem %s5, %s610
        %p612 = scmp.lt.s32.totalorder %s31, 1
        %s613 = scalar_select %p612, %s31, 1
        %s614 = smul.addr %s613, 8
        %s615 = scalar_lea.vmem %s13, %s614
        %p616 = scmp.lt.s32.totalorder %s31, 1
        %s617 = scalar_select %p616, %s31, 1
        %s618 = scalar_lea.vmem %s14, %s617
        %p619 = scmp.lt.s32.totalorder %s31, 1
        %s620 = scalar_select %p619, %s31, 1
        %s621 = scalar_lea.vmem %s16, %s620
        %v623 = vld [vmem:[%s593] sm:$0xf]
        %v624 = vunpack.c.l.bf16 %v623
        %v625 = vld [vmem:[%s597] sm:$0x7]
        %v626 = vld [vmem:[%s601] sm:$0xff]
        %v627 = vld [vmem:[%s604] sm:$0x1]
        %v628 = vld [vmem:[%s608] sm:$0xff]
        %v629 = vld [vmem:[%s611] sm:$0x1]
        %v630 = vld [vmem:[%s6] sm:$0xf]
        %v631 = vld [vmem:[%s6 + $0x4] sm:$0xf]
        %v632 = vld [vmem:[%s6 + $0x8] sm:$0xf]
        %v633 = vld [vmem:[%s6 + $0xc] sm:$0xf]
        %v634 = vpack.c.bf16 %v625, %v625
        %v635 = vld [vmem:[%s7] sm:$0xf]
        %v636 = vld [vmem:[%s7 + $0x4] sm:$0xf]
        %v637 = vld [vmem:[%s7 + $0x8] sm:$0xf]
        %v638 = vld [vmem:[%s7 + $0xc] sm:$0xf]
        %v639 = vld [vmem:[%s10] sm:$0x1]
        %v644 = vunpack.c.l.b16 %v635
        %v645 = vunpack.c.l.b16 %v636
        %v646 = vunpack.c.l.b16 %v637
        %v647 = vunpack.c.l.b16 %v638
        %v648 = vpack.c.b16 %v645, %v644
        %v649 = vpack.c.b16 %v647, %v646
        %vm652 = vcmask 261120
        %v654 = vsel %vm652, %v634, 0
        %656 = vmatprep.subr.bf16.mxu0 0
        %657 = vmatpush1.bf16.msra.mxu0 %v648
        %658 = vmatprep.subr.bf16.mxu0 0
        %659 = vmatpush1.bf16.msra.mxu0 %v649
        %660 = vmatprep.subr.bf16.mxu0 0
        %661 = vmatpush1.bf16.msra.mxu0 0
        %662 = vmatprep.subr.bf16.mxu0 0
        %663 = vmatpush1.bf16.msra.mxu0 0
        %664 = vmatprep.subr.bf16.mxu0 0
        %665 = vmatpush1.bf16.msra.mxu0 0
        %666 = vmatprep.subr.bf16.mxu0 0
        %667 = vmatpush1.bf16.msra.mxu0 0
        %668 = vmatprep.subr.bf16.mxu0 0
        %669 = vmatpush1.bf16.msra.mxu0 0
        %670 = vmatprep.subr.bf16.mxu0 0
        %671 = vmatpush1.bf16.msra.mxu0 0
        %672 = vmatprep.subr.bf16.mxu0 0
        %673 = vmatpush1.bf16.msra.mxu0 0
        %674 = vmatprep.subr.bf16.mxu0 0
        %675 = vmatpush1.bf16.msra.mxu0 0
        %676 = vmatprep.subr.bf16.mxu0 0
        %677 = vmatpush1.bf16.msra.mxu0 0
        %678 = vmatprep.subr.bf16.mxu0 0
        %679 = vmatpush1.bf16.msra.mxu0 0
        %680 = vmatprep.subr.bf16.mxu0 0
        %681 = vmatpush1.bf16.msra.mxu0 0
        %682 = vmatprep.subr.bf16.mxu0 0
        %683 = vmatpush1.bf16.msra.mxu0 0
        %684 = vmatprep.subr.bf16.mxu0 0
        %685 = vmatpush1.bf16.msra.mxu0 0
        %686 = vmatprep.subr.bf16.mxu0 0
        %687 = vmatpush1.bf16.msra.mxu0 0
        %688 = vmatprep.mubr.bf16.mxu0 0
        %689 = vmatmul.mubr.bf16.gmra.mrb[0].mxu0 %v654
        %v690 = vpop.f32.mrb[0].mxu0
        %v691 = vadd.f32 %v639, %v690
        %v692 = vpop.f32.mrb[0].mxu0
        %v693 = vpop.f32.mrb[0].mxu0
        %v694 = vpop.f32.mrb[0].mxu0
        %695 = vdwg.mxu0
        %v696 = vlaneseq
        %v697 = vshrl.u32 %v696, 7
        %v698 = vsub.s32 0, %v697
        %v699 = vrot.slane %v691, %v698
        %v704 = vunpack.c.l.b16 %v630
        %v705 = vunpack.c.l.b16 %v631
        %v706 = vunpack.c.l.b16 %v632
        %v707 = vunpack.c.l.b16 %v633
        %v708 = vpack.c.b16 %v705, %v704
        %v709 = vpack.c.b16 %v707, %v706
        %v713 = vsel %vm652, %v623, 0
        %715 = vmatprep.subr.bf16.mxu0 0
        %716 = vmatpush1.bf16.msra.mxu0 %v708
        %717 = vmatprep.subr.bf16.mxu0 0
        %718 = vmatpush1.bf16.msra.mxu0 %v709
        %719 = vmatprep.subr.bf16.mxu0 0
        %720 = vmatpush1.bf16.msra.mxu0 0
        %721 = vmatprep.subr.bf16.mxu0 0
        %722 = vmatpush1.bf16.msra.mxu0 0
        %723 = vmatprep.subr.bf16.mxu0 0
        %724 = vmatpush1.bf16.msra.mxu0 0
        %725 = vmatprep.subr.bf16.mxu0 0
        %726 = vmatpush1.bf16.msra.mxu0 0
        %727 = vmatprep.subr.bf16.mxu0 0
        %728 = vmatpush1.bf16.msra.mxu0 0
        %729 = vmatprep.subr.bf16.mxu0 0
        %730 = vmatpush1.bf16.msra.mxu0 0
        %731 = vmatprep.subr.bf16.mxu0 0
        %732 = vmatpush1.bf16.msra.mxu0 0
        %733 = vmatprep.subr.bf16.mxu0 0
        %734 = vmatpush1.bf16.msra.mxu0 0
        %735 = vmatprep.subr.bf16.mxu0 0
        %736 = vmatpush1.bf16.msra.mxu0 0
        %737 = vmatprep.subr.bf16.mxu0 0
        %738 = vmatpush1.bf16.msra.mxu0 0
        %739 = vmatprep.subr.bf16.mxu0 0
        %740 = vmatpush1.bf16.msra.mxu0 0
        %741 = vmatprep.subr.bf16.mxu0 0
        %742 = vmatpush1.bf16.msra.mxu0 0
        %743 = vmatprep.subr.bf16.mxu0 0
        %744 = vmatpush1.bf16.msra.mxu0 0
        %745 = vmatprep.subr.bf16.mxu0 0
        %746 = vmatpush1.bf16.msra.mxu0 0
        %747 = vmatprep.mubr.bf16.mxu0 0
        %748 = vmatmul.mubr.bf16.gmra.mrb[0].mxu0 %v713
        %v749 = vpop.f32.mrb[0].mxu0
        %v750 = vadd.f32 %v699, %v749
        %v751 = vpop.f32.mrb[0].mxu0
        %v752 = vpop.f32.mrb[0].mxu0
        %v753 = vpop.f32.mrb[0].mxu0
        %754 = vdwg.mxu0
        %v755 = vmax.f32 %v750, 0.0
        %v756 = vld [vmem:[%s8] sm:$0x3]
        %v757 = vlaneseq
        %v758 = vshrl.u32 %v757, 7
        %v759 = vsub.s32 0, %v758
        %v760 = vrot.slane %v756, %v759
        %v761 = vmul.f32 %v755, %v760
        %v762 = vsel %vm652, %v761, 0.0
        %763 = vadd.xlane.f32.xlu0 %v762
        %v764 = vpop.xlane.xlu0 %763
        %v765 = vlaneseq
        %v766 = vshrl.u32 %v765, 7
        %v767 = vsub.s32 1, %v766
        %v768 = vrot.slane %v756, %v767
        %v769 = vmul.f32 %v755, %v768
        %v770 = vsel %vm652, %v769, 0.0
        %771 = vadd.xlane.f32.xlu0 %v770
        %v772 = vpop.xlane.xlu0 %771
        %vm773 = vcmask 7168
        %v774 = vsel %vm773, %v764, %v772
        %v775 = vld [vmem:[%s11] sm:$0x1]
        %v777 = vlaneseq
        %v778 = vshrl.u32 %v777, 7
        %v779 = vsub.s32 0, %v778
        %v780 = vrot.slane %v775, %v779
        %v782 = vadd.f32 %v774, %v780
        %v783 = vsub.f32 0.0, %v782
        %v784 = vmul.f32 %v783, 1.442695
        %v785 = vpow.pop %v784
        %v786 = vadd.f32 %v785, 1.0
        %v787 = vrcp.pop %v786
        %v788 = vmul.f32 1.0, %v787
        %v789 = vadd.f32 %v782, %v628
        %v790 = vsub.f32 0.0, %v789
        %v791 = vmul.f32 %v790, 1.442695
        %v792 = vpow.pop %v791
        %v793 = vadd.f32 %v792, 1.0
        %v794 = vrcp.pop %v793
        %v795 = vmul.f32 1.0, %v794
        %v796 = vadd.f32 %v788, 1e-10
        %798 = vrot.lane.b32.xlu0 %v796, 1
        %v799 = vpop.permute.xlu0 %798
        %v801 = vrcp.pop %v799
        %v802 = vmul.f32 %v796, %v801
        %v803 = vlog2.pop %v802
        %v804 = vmul.f32 %v803, 0.6931472
        %v805 = vmul.f32 %v788, %v804
        %v806 = vsub.f32 1.0, %v788
        %v807 = vadd.f32 %v806, 1e-10
        %809 = vrot.lane.b32.xlu0 %v807, 1
        %v810 = vpop.permute.xlu0 %809
        %v812 = vrcp.pop %v810
        %v813 = vmul.f32 %v807, %v812
        %v814 = vlog2.pop %v813
        %v815 = vmul.f32 %v814, 0.6931472
        %v816 = vmul.f32 %v806, %v815
        %v817 = vadd.f32 %v805, %v816
        %819 = vrot.lane.b32.xlu0 %v626, 1
        %v820 = vpop.permute.xlu0 %819
        %v822 = vmul.f32 %v817, %v820
        %vm823 = vcmask 15368
        %v824 = vsel %vm823, %v822, 0.0
        %v825 = vrot.slane %v824, 4
        %v826 = vadd.f32 %v824, %v825
        %v827 = vrot.slane %v826, 2
        %v828 = vadd.f32 %v826, %v827
        %v829 = vrot.slane %v828, 1
        %v830 = vadd.f32 %v828, %v829
        %v832 = vlaneseq
        %v833 = vshrl.u32 %v832, 7
        %v834 = vsub.s32 0, %v833
        %v835 = vrot.slane %v627, %v834
        %836 = vrot.lane.b32.xlu0 %v835, 1
        %v837 = vpop.permute.xlu0 %836
        %v839 = vrcp.pop %v837
        %v840 = vmul.f32 %v830, %v839
        %vm841 = vcmp.gt.f32.partialorder %v795, 0.5
        %vm842 = vcmp.gt.f32.partialorder %v626, 0.5
        %v843 = vsel %vm842, 1, 0
        %844 = vrot.lane.b32.xlu0 %v843, 1
        %v845 = vpop.permute.xlu0 %844
        %vm846 = vcmp.ne.s32.totalorder %v845, 0
        %vm847 = vmand %vm841, %vm846
        %v848 = vsel %vm847, 1.0, 0.0
        %v849 = vsel %vm823, %v848, 0.0
        %v850 = vrot.slane %v849, 4
        %v851 = vadd.f32 %v849, %v850
        %v852 = vrot.slane %v851, 2
        %v853 = vadd.f32 %v851, %v852
        %v854 = vrot.slane %v853, 1
        %v855 = vadd.f32 %v853, %v854
        %v856 = vadd.f32 %v855, 1.0
        %858 = vset.pattern.permute.xlu0 1
        %859 = vperm.xlu0 %858, %v848
        %v860 = vpop.permute.xlu0 %859
        %v862 = vmul.f32 %v624, %v860
        %v863 = vsel %vm652, %v862, 0.0
        %v864 = vrot.slane %v863, 4
        %v865 = vadd.f32 %v863, %v864
        %v866 = vrot.slane %v865, 2
        %v867 = vadd.f32 %v865, %v866
        %v868 = vrot.slane %v867, 1
        %v869 = vadd.f32 %v867, %v868
        %871 = vset.pattern.permute.xlu0 1
        %872 = vperm.xlu0 %871, %v856
        %v873 = vpop.permute.xlu0 %872
        %v875 = vrcp.pop %v873
        %v876 = vmul.f32 %v869, %v875
        %v877 = vpack.c.bf16 %v876, %v876
        %v878 = vld [vmem:[%s9] sm:$0xf]
        %v879 = vld [vmem:[%s9 + $0x4] sm:$0xf]
        %v880 = vld [vmem:[%s9 + $0x8] sm:$0xf]
        %v881 = vld [vmem:[%s9 + $0xc] sm:$0xf]
        %v882 = vld [vmem:[%s12] sm:$0x1]
        %v887 = vunpack.c.l.b16 %v878
        %v888 = vunpack.c.l.b16 %v879
        %v889 = vunpack.c.l.b16 %v880
        %v890 = vunpack.c.l.b16 %v881
        %v891 = vpack.c.b16 %v888, %v887
        %v892 = vpack.c.b16 %v890, %v889
        %v896 = vsel %vm652, %v877, 0
        %898 = vmatprep.subr.bf16.mxu0 0
        %899 = vmatpush1.bf16.msra.mxu0 %v891
        %900 = vmatprep.subr.bf16.mxu0 0
        %901 = vmatpush1.bf16.msra.mxu0 %v892
        %902 = vmatprep.subr.bf16.mxu0 0
        %903 = vmatpush1.bf16.msra.mxu0 0
        %904 = vmatprep.subr.bf16.mxu0 0
        %905 = vmatpush1.bf16.msra.mxu0 0
        %906 = vmatprep.subr.bf16.mxu0 0
        %907 = vmatpush1.bf16.msra.mxu0 0
        %908 = vmatprep.subr.bf16.mxu0 0
        %909 = vmatpush1.bf16.msra.mxu0 0
        %910 = vmatprep.subr.bf16.mxu0 0
        %911 = vmatpush1.bf16.msra.mxu0 0
        %912 = vmatprep.subr.bf16.mxu0 0
        %913 = vmatpush1.bf16.msra.mxu0 0
        %914 = vmatprep.subr.bf16.mxu0 0
        %915 = vmatpush1.bf16.msra.mxu0 0
        %916 = vmatprep.subr.bf16.mxu0 0
        %917 = vmatpush1.bf16.msra.mxu0 0
        %918 = vmatprep.subr.bf16.mxu0 0
        %919 = vmatpush1.bf16.msra.mxu0 0
        %920 = vmatprep.subr.bf16.mxu0 0
        %921 = vmatpush1.bf16.msra.mxu0 0
        %922 = vmatprep.subr.bf16.mxu0 0
        %923 = vmatpush1.bf16.msra.mxu0 0
        %924 = vmatprep.subr.bf16.mxu0 0
        %925 = vmatpush1.bf16.msra.mxu0 0
        %926 = vmatprep.subr.bf16.mxu0 0
        %927 = vmatpush1.bf16.msra.mxu0 0
        %928 = vmatprep.subr.bf16.mxu0 0
        %929 = vmatpush1.bf16.msra.mxu0 0
        %930 = vmatprep.mubr.bf16.mxu0 0
        %931 = vmatmul.mubr.bf16.gmra.mrb[0].mxu0 %v896
        %v932 = vpop.f32.mrb[0].mxu0
        %v933 = vadd.f32 %v882, %v932
        %v934 = vpop.f32.mrb[0].mxu0
        %v935 = vpop.f32.mrb[0].mxu0
        %v936 = vpop.f32.mrb[0].mxu0
        %937 = vdwg.mxu0
        %v938 = vmul.f32 %v933, %v625
        %vm939 = vcmask 253952
        %v940 = vsel %vm939, %v938, 0.0
        %941 = vadd.xlane.f32.xlu0 %v940
        %v942 = vpop.xlane.xlu0 %941
        %944 = vrot.lane.b32.xlu0 %v625, 32
        %v945 = vpop.permute.xlu0 %944
        %v947 = vmul.f32 %v933, %v945
        %949 = vrot.lane.b32.xlu0 %v947, 96
        %v950 = vpop.permute.xlu0 %949
        %v952 = vsel %vm939, %v950, 0.0
        %953 = vadd.xlane.f32.xlu0 %v952
        %v954 = vpop.xlane.xlu0 %953
        %955 = vrot.lane.b32.xlu0 %v625, 64
        %v956 = vpop.permute.xlu0 %955
        %v958 = vmul.f32 %v933, %v956
        %960 = vrot.lane.b32.xlu0 %v958, 64
        %v961 = vpop.permute.xlu0 %960
        %v963 = vsel %vm939, %v961, 0.0
        %964 = vadd.xlane.f32.xlu0 %v963
        %v965 = vpop.xlane.xlu0 %964
        %966 = vrot.lane.b32.xlu0 %v625, 96
        %v967 = vpop.permute.xlu0 %966
        %v969 = vmul.f32 %v933, %v967
        %971 = vrot.lane.b32.xlu0 %v969, 32
        %v972 = vpop.permute.xlu0 %971
        %v974 = vsel %vm939, %v972, 0.0
        %975 = vadd.xlane.f32.xlu0 %v974
        %v976 = vpop.xlane.xlu0 %975
        %v977 = vsel %vm773, %v942, %v954
        %vm978 = vcmask 15360
        %v979 = vsel %vm978, %v977, %v965
        %vm980 = vcmask 23552
        %v981 = vsel %vm980, %v979, %v976
        %v982 = vadd.f32 %v981, %v629
        %vm983 = vcmask 24576
        %v984 = vsel %vm983, %v982, -inf
        %985 = vmax.xlane.f32.xlu0 %v984
        %v986 = vpop.xlane.xlu0 %985
        %v987 = vsub.f32 %v982, %v986
        %v988 = vmul.f32 %v987, 1.442695
        %v989 = vpow.pop %v988
        %v990 = vsel %vm983, %v989, 0.0
        %991 = vadd.xlane.f32.xlu0 %v990
        %v992 = vpop.xlane.xlu0 %991
        %v993 = vrcp.pop %v992
        %v994 = vmul.f32 %v989, %v993
        %v995 = vsel %vm983, %v994, -inf
        %996 = vmax.xlane.f32.xlu0 %v995
        %v997 = vpop.xlane.xlu0 %996
        %v998 = vlaneseq
        %v999 = vand.u32 %v998, 127
        %vm1000 = vcmp.eq.f32.partialorder %v994, %v997
        %v1001 = vsel %vm1000, %v999, 4
        %v1002 = vsel %vm983, %v1001, 2147483647
        %v1003 = vand.u32 %v1002, 65535
        %v1004 = vshra.s32 %v1002, 16
        %v1005 = vcvt.s32.f32 %v1003
        %v1006 = vcvt.s32.f32 %v1004
        %1007 = vmin.xlane.f32.xlu0 %v1006
        %v1008 = vpop.xlane.xlu0 %1007
        %vm1009 = vcmp.eq.f32.partialorder %v1006, %v1008
        %v1010 = vsel %vm1009, %v1005, inf
        %1011 = vmin.xlane.f32.xlu0 %v1010
        %v1012 = vpop.xlane.xlu0 %1011
        %v1013 = vcvt.f32.s32 %v1012
        %v1014 = vcvt.f32.s32 %v1008
        %v1015 = vshll.u32 %v1014, 16
        %v1016 = vadd.s32 %v1015, %v1013
        %1018 = vset.pattern.permute.xlu0 0
        %1019 = vperm.xlu0 %1018, %v994
        %v1020 = vpop.permute.xlu0 %1019
        %v1022 = vmul.f32 %v933, %v1020
        %1023 = vset.pattern.permute.xlu0 1
        %1024 = vperm.xlu0 %1023, %v994
        %v1025 = vpop.permute.xlu0 %1024
        %v1027 = vmul.f32 %v933, %v1025
        %1029 = vrot.lane.b32.xlu0 %v1027, 96
        %v1030 = vpop.permute.xlu0 %1029
        %v1032 = vadd.f32 %v1022, %v1030
        %1033 = vset.pattern.permute.xlu0 2
        %1034 = vperm.xlu0 %1033, %v994
        %v1035 = vpop.permute.xlu0 %1034
        %v1037 = vmul.f32 %v933, %v1035
        %1039 = vrot.lane.b32.xlu0 %v1037, 64
        %v1040 = vpop.permute.xlu0 %1039
        %v1042 = vadd.f32 %v1032, %v1040
        %1043 = vset.pattern.permute.xlu0 3
        %1044 = vperm.xlu0 %1043, %v994
        %v1045 = vpop.permute.xlu0 %1044
        %v1047 = vmul.f32 %v933, %v1045
        %1049 = vrot.lane.b32.xlu0 %v1047, 32
        %v1050 = vpop.permute.xlu0 %1049
        %v1052 = vadd.f32 %v1042, %v1050
        %v1053 = vrot.slane %v625, 1
        %v1055 = vmul.f32 %v625, %v1053
        %v1056 = vsel %vm939, %v1055, 0.0
        %1057 = vadd.xlane.f32.xlu0 %v1056
        %v1058 = vpop.xlane.xlu0 %1057
        %v1059 = vrot.slane %v625, 2
        %v1061 = vmul.f32 %v625, %v1059
        %v1062 = vsel %vm939, %v1061, 0.0
        %1063 = vadd.xlane.f32.xlu0 %v1062
        %v1064 = vpop.xlane.xlu0 %1063
        %v1065 = vsub.f32 1.0, %v1058
        %v1066 = vadd.f32 %v1065, %v1064
        %v1067 = vmax.f32 %v1066, 0.0
        %v1068 = vmul.f32 %v795, %v820
        %v1069 = vsel %vm823, %v1068, 0.0
        %v1070 = vrot.slane %v1069, 4
        %v1071 = vadd.f32 %v1069, %v1070
        %v1072 = vrot.slane %v1071, 2
        %v1073 = vadd.f32 %v1071, %v1072
        %v1074 = vrot.slane %v1073, 1
        %v1075 = vadd.f32 %v1073, %v1074
        %v1076 = vmul.f32 %v1075, %v839
        %v1077 = vmul.f32 %v795, %v626
        %v1078 = vsel %vm773, %v1077, 0.0
        %v1079 = vrot.slane %v1078, 4
        %v1080 = vadd.f32 %v1078, %v1079
        %v1081 = vrot.slane %v1080, 2
        %v1082 = vadd.f32 %v1080, %v1081
        %v1083 = vrot.slane %v1082, 1
        %v1084 = vadd.f32 %v1082, %v1083
        %v1085 = vrcp.pop %v627
        %v1086 = vmul.f32 %v1084, %v1085
        %1087 = vst.msk [vmem:[%s615] sm:$0xff] %vm978, %v795
        %vm1088 = vcmask 0
        %1089 = vst.msk [vmem:[%s618] sm:$0x1] %vm1088, %v1016
        %1090 = vst.msk [vmem:[%s584] sm:$0x1] %vm939, %v1052
        %1092 = vrot.lane.b32.xlu0 %v1086, 2
        %v1093 = vpop.permute.xlu0 %1092
        %1096 = vrot.lane.b32.xlu0 %v840, 2
        %v1097 = vpop.permute.xlu0 %1096
        %v1099 = vsel %vm773, %v1067, %v1076
        %v1100 = vsel %vm978, %v1099, %v1093
        %v1101 = vsel %vm980, %v1100, %v1097
        %1102 = vst.msk [vmem:[%s621] sm:$0x1] %vm983, %v1101
        %p1103 = scmp.lt.s32.totalorder %s31, 1
        %s1104 = scalar_select %p1103, %s31, 1
        %s1105 = smul.addr %s1104, 8
        %s1106 = scalar_lea.vmem %s13, %s1105
        %p1107 = scmp.lt.s32.totalorder %s31, 1
        %s1108 = scalar_select %p1107, %s31, 1
        %s1109 = scalar_lea.vmem %s14, %s1108
        %s1110 = sand.u32 %s394, 1
        %s1111 = scalar_lea.sflag [#allocation3], %s1110
        %s1112 = sand.u32 %s394, 1
        %s1113 = scalar_lea.vmem [#allocation2], %s1112
        %p1114 = scmp.lt.s32.totalorder %s31, 1
        %s1115 = scalar_select %p1114, %s31, 1
        %s1116 = scalar_lea.vmem %s16, %s1115
        // Predicated region
        $region73: #{forward.3} parent=71 // pred_check
          %p1117 = pneg %p352
        $region74: #{forward.3} parent=71 // pred_check_branch
          %1119 = sbr.rel (%p1117) target = $region76
        $region75: #{forward.3} parent=71 // pred_region
          _
        $region76: #{forward.3} parent=71 // pred_fallthru
          _
        // Predicated region
        $region77: #{forward.3} parent=71 // pred_check
          %p1120 = pneg %p378
        $region78: #{forward.3} parent=71 // pred_check_branch
          %1122 = sbr.rel (%p1120) target = $region80
        $region79: #{forward.3} parent=71 // pred_region
          _
        $region80: #{forward.3} parent=71 // pred_fallthru
          _
        // Predicated region
        $region81: #{forward.3} parent=71 // pred_check
          %p1123 = pneg %p404
        $region82: #{forward.3} parent=71 // pred_check_branch
          %1125 = sbr.rel (%p1123) target = $region84
        $region83: #{forward.3} parent=71 // pred_region
          %s1127 = ssub.s32 16, 16
          %1128 = vsyncadd %s1111, %s1127
          %s1129 = smul.addr %s31, 16
          %s1130 = scalar_lea.hbm %s15, %s1129
          %s1132 = sshll.u32 %s1113, 4
          %s1133 = int_to_ptr.vmem [resolvable:$true] %s1132
          %1135 = dma.vmem_to_hbm [thread:$0]  %s1133, 16, %s1130, %s1111
        $region84: #{forward.3} parent=71 // pred_fallthru
          _
        // Predicated region
        $region85: #{forward.3} parent=71 // pred_check
          %p1136 = pneg %p430
        $region86: #{forward.3} parent=71 // pred_check_branch
          %1138 = sbr.rel (%p1136) target = $region88
        $region87: #{forward.3} parent=71 // pred_region
          _
        $region88: #{forward.3} parent=71 // pred_fallthru
          _
      $region72: #{forward.3} parent=5 // pred_fallthru
        _
      %p1139 = scmp.le.s32.totalorder 2, %s26
      // Predicated region
      $region89: #{forward.3} parent=5 // pred_check
        %p1140 = pneg %p1139
      $region90: #{forward.3} parent=5 // pred_check_branch
        %1142 = sbr.rel (%p1140) target = $region92
      $region91: #{forward.3} parent=5 // pred_region
        %s1143 = ssub.s32 %s26, 2
        // Predicated region
        $region93: #{forward.3} parent=91 // pred_check
          %p1144 = pneg %p358
        $region94: #{forward.3} parent=91 // pred_check_branch
          %1146 = sbr.rel (%p1144) target = $region96
        $region95: #{forward.3} parent=91 // pred_region
          %p1147 = scmp.lt.s32.totalorder %s32, 1
          %s1148 = scalar_select %p1147, %s32, 1
          %s1149 = smul.addr %s1148, 8
          %s1150 = scalar_lea.vmem %s13, %s1149
        $region96: #{forward.3} parent=91 // pred_fallthru
          _
        // Predicated region
        $region97: #{forward.3} parent=91 // pred_check
          %p1151 = pneg %p384
        $region98: #{forward.3} parent=91 // pred_check_branch
          %1153 = sbr.rel (%p1151) target = $region100
        $region99: #{forward.3} parent=91 // pred_region
          %p1154 = scmp.lt.s32.totalorder %s32, 1
          %s1155 = scalar_select %p1154, %s32, 1
          %s1156 = scalar_lea.vmem %s14, %s1155
        $region100: #{forward.3} parent=91 // pred_fallthru
          _
        // Predicated region
        $region101: #{forward.3} parent=91 // pred_check
          %p1157 = pneg %p410
        $region102: #{forward.3} parent=91 // pred_check_branch
          %1159 = sbr.rel (%p1157) target = $region104
        $region103: #{forward.3} parent=91 // pred_region
          %s1160 = sand.u32 %s395, 1
          %s1161 = scalar_lea.sflag [#allocation3], %s1160
          %s1162 = sand.u32 %s395, 1
          %s1163 = scalar_lea.vmem [#allocation2], %s1162
          %1164 = dma.done %s1161, 16
        $region104: #{forward.3} parent=91 // pred_fallthru
          _
        // Predicated region
        $region105: #{forward.3} parent=91 // pred_check
          %p1165 = pneg %p436
        $region106: #{forward.3} parent=91 // pred_check_branch
          %1167 = sbr.rel (%p1165) target = $region108
        $region107: #{forward.3} parent=91 // pred_region
          %p1168 = scmp.lt.s32.totalorder %s32, 1
          %s1169 = scalar_select %p1168, %s32, 1
          %s1170 = scalar_lea.vmem %s16, %s1169
        $region108: #{forward.3} parent=91 // pred_fallthru
          _
      $region92: #{forward.3} parent=5 // pred_fallthru
        _
    $region6: #{forward.3} parent=1 // loop_footer
      %s30 = sadd.s32 1, %s26
    $region7: #{forward.3} parent=1 // loop_footer_branch
      %25 = sbr.rel target = $region3
    $region8: #{forward.3} parent=1 // loop_exit
      _
    %1171 = vsyncpa [#allocation3], 1
    %s1172 = scalar_lea.sflag [#allocation3], 1
    %1173 = vsyncpa %s1172, 1

</llo_original>
